<compile_context>
chip_gen: v7x
topology: tpu7x:2x2x1
jax: 0.10.0
libtpu: 0.0.40
codegen_flags: <defaults>
</compile_context>

<pallas_src>
import functools

import jax
import jax.numpy as jnp
from jax.experimental import pallas as pl
from jax.experimental.pallas import tpu as pltpu


def _f4_linear_kernel(x_ref, w_ref, b_ref, o_ref):
    """One batch tile: o = x @ w.T + b, via per-output-feature VPU MAC + lane reduce."""
    x = x_ref[...].astype(jnp.float32)          # (tb, K)     K dense on lanes
    w = w_ref[...].astype(jnp.float32)          # (n_out, K)  K dense on lanes
    n_out = w_ref.shape[0]                      # static (= 2)

    cols = []
    for n in range(n_out):                      # unrolled: n_out is tiny
        # (1, K) broadcast over (tb, K): VPU multiply, then XLU reduce over lanes.
        cols.append(jnp.sum(x * w[n:n + 1, :], axis=-1, keepdims=True))   # (tb, 1)

    acc = jnp.concatenate(cols, axis=-1)        # (tb, n_out) f32 accumulator
    acc = acc + b_ref[...].astype(jnp.float32)  # fused bias epilogue
    o_ref[...] = acc.astype(o_ref.dtype)        # single fused store per tile


@functools.partial(jax.jit, static_argnames=("block_rows",))
def f4_forward(x, weight, bias, *, block_rows=128):
    """Pallas equivalent of F4.forward: nn.Linear(15808, 2) on x of shape (B, 15808).

    weight: (2, 15808)  -- PyTorch layout, used as-is (no transpose)
    bias:   (2,)
    """
    B, K = x.shape
    n_out, k_w = weight.shape
    assert k_w == K, f"in_features mismatch: {k_w} vs {K}"
    assert bias.shape == (n_out,)

    # Batch tile: as large as practical; must be a multiple of 8 (sublanes) or == B.
    if B <= block_rows:
        tb = B
    else:
        tb = (block_rows // 8) * 8

    grid = (pl.cdiv(B, tb),)
    bias2d = bias.reshape(1, n_out)

    return pl.pallas_call(
        _f4_linear_kernel,
        out_shape=jax.ShapeDtypeStruct((B, n_out), x.dtype),
        grid_spec=pltpu.PrefetchScalarGridSpec(
            num_scalar_prefetch=0,
            grid=grid,
            in_specs=[
                pl.BlockSpec((tb, K), lambda i: (i, 0)),      # x: streams per batch tile
                pl.BlockSpec((n_out, K), lambda i: (0, 0)),   # weight: resident, DMA'd once
                pl.BlockSpec((1, n_out), lambda i: (0, 0)),   # bias: resident
            ],
            out_specs=pl.BlockSpec((tb, n_out), lambda i: (i, 0)),
        ),
        compiler_params=pltpu.CompilerParams(
            dimension_semantics=("parallel",),     # batch tiles are independent
            vmem_limit_bytes=48 * 1024 * 1024,     # explicit; safe on v5e/v6e/v7x (64 MiB)
        ),
    )(x, weight, bias2d)


if __name__ == "__main__":
    key = jax.random.PRNGKey(0)
    kx, kw, kb = jax.random.split(key, 3)

    B, K, N_OUT = 8, 15808, 2          # K is fixed by the module: nn.Linear(15808, 2)
    x = jax.random.normal(kx, (B, K), dtype=jnp.float32)
    weight = jax.random.normal(kw, (N_OUT, K), dtype=jnp.float32) * 0.01
    bias = jax.random.normal(kb, (N_OUT,), dtype=jnp.float32)

    y = jax.block_until_ready(f4_forward(x, weight, bias))

    y_ref = x @ weight.T + bias
    assert y.shape == (B, N_OUT), y.shape
    assert jnp.allclose(y, y_ref, rtol=1e-3, atol=5e-3), (
        f"max abs err = {jnp.max(jnp.abs(y - y_ref))}")

    print("KERNEL_OK")
</pallas_src>

<mosaic_0001>
module attributes {stable_mosaic.version = 11 : i64} {
  func.func @_f4_linear_kernel(%arg0: i32, %arg1: memref<8x15808xf32, #tpu.memory_space<vmem>>, %arg2: memref<2x15808xf32, #tpu.memory_space<vmem>>, %arg3: memref<1x2xf32, #tpu.memory_space<vmem>>, %arg4: memref<8x2xf32, #tpu.memory_space<vmem>>) attributes {dimension_semantics = [#tpu.dimension_semantics<parallel>], iteration_bounds = array<i64: 1>, scalar_prefetch = 0 : i64, scratch_operands = 0 : i64, tpu.core_type = #tpu.core_type<tc>, window_params = [{transform_indices = @transform_0, window_bounds = array<i64: 8, 15808>}, {pipeline_mode = #tpu.pipeline_mode<synchronous>, transform_indices = @transform_1, window_bounds = array<i64: 2, 15808>}, {pipeline_mode = #tpu.pipeline_mode<synchronous>, transform_indices = @transform_2, window_bounds = array<i64: 1, 2>}, {transform_indices = @transform_3, window_bounds = array<i64: 8, 2>}]} {
    %c0 = arith.constant 0 : index
    %c0_0 = arith.constant 0 : index
    %0 = vector.load %arg1[%c0, %c0_0] : memref<8x15808xf32, #tpu.memory_space<vmem>>, vector<8x15808xf32>
    %c0_1 = arith.constant 0 : index
    %c0_2 = arith.constant 0 : index
    %1 = vector.load %arg2[%c0_1, %c0_2] : memref<2x15808xf32, #tpu.memory_space<vmem>>, vector<2x15808xf32>
    %2 = vector.extract_strided_slice %1 {offsets = [0, 0], sizes = [1, 15808], strides = [1, 1]} : vector<2x15808xf32> to vector<1x15808xf32>
    %3 = vector.broadcast %2 : vector<1x15808xf32> to vector<8x15808xf32>
    %4 = arith.mulf %0, %3 : vector<8x15808xf32>
    %cst = arith.constant dense<0.000000e+00> : vector<8xf32>
    %5 = vector.multi_reduction <add>, %4, %cst [1] : vector<8x15808xf32> to vector<8xf32>
    %6 = vector.shape_cast %5 : vector<8xf32> to vector<8x1xf32>
    %7 = vector.extract_strided_slice %1 {offsets = [1, 0], sizes = [1, 15808], strides = [1, 1]} : vector<2x15808xf32> to vector<1x15808xf32>
    %8 = vector.broadcast %7 : vector<1x15808xf32> to vector<8x15808xf32>
    %9 = arith.mulf %0, %8 : vector<8x15808xf32>
    %cst_3 = arith.constant dense<0.000000e+00> : vector<8xf32>
    %10 = vector.multi_reduction <add>, %9, %cst_3 [1] : vector<8x15808xf32> to vector<8xf32>
    %11 = vector.shape_cast %10 : vector<8xf32> to vector<8x1xf32>
    %12 = tpu.concatenate %6, %11 in 1 : vector<8x1xf32>, vector<8x1xf32> -> vector<8x2xf32>
    %c0_4 = arith.constant 0 : index
    %c0_5 = arith.constant 0 : index
    %13 = vector.load %arg3[%c0_4, %c0_5] : memref<1x2xf32, #tpu.memory_space<vmem>>, vector<1x2xf32>
    %14 = vector.broadcast %13 : vector<1x2xf32> to vector<8x2xf32>
    %15 = arith.addf %12, %14 : vector<8x2xf32>
    %c0_6 = arith.constant 0 : index
    %c0_7 = arith.constant 0 : index
    %16 = vector.load %arg4[%c0_6, %c0_7] : memref<8x2xf32, #tpu.memory_space<vmem>>, vector<8x2xf32>
    tpu.vector_store %arg4[%c0_6, %c0_7], %15 {strides = array<i32>} : memref<8x2xf32, #tpu.memory_space<vmem>>, vector<8x2xf32>,
    return
  }
  func.func @transform_0(%arg0: i32) -> (i32, i32) {
    %c0_i32 = arith.constant 0 : i32
    %c0_i32_0 = arith.constant 0 : i32
    return %arg0, %c0_i32 : i32, i32
  }
  func.func @transform_1(%arg0: i32) -> (i32, i32) {
    %c0_i32 = arith.constant 0 : i32
    %c0_i32_0 = arith.constant 0 : i32
    %c0_i32_1 = arith.constant 0 : i32
    return %c0_i32, %c0_i32_0 : i32, i32
  }
  func.func @transform_2(%arg0: i32) -> (i32, i32) {
    %c0_i32 = arith.constant 0 : i32
    %c0_i32_0 = arith.constant 0 : i32
    %c0_i32_1 = arith.constant 0 : i32
    return %c0_i32, %c0_i32_0 : i32, i32
  }
  func.func @transform_3(%arg0: i32) -> (i32, i32) {
    %c0_i32 = arith.constant 0 : i32
    %c0_i32_0 = arith.constant 0 : i32
    return %arg0, %c0_i32 : i32, i32
  }
}

</mosaic_0001>

<llo_original>
// kernel: f4_forward.1
$region0: #{f4_forward.1}
  #allocation0 [shape = 'u32[]', space=smem, size = 0x4, offset = 0x4, fixed_abs, tag = 'smem constant byte address 0x4 - core index']
  #allocation1 [shape = 'u32[144,128]{1,0:T(1,128)}', space=vmem, size = 0x12000, scoped, tag = 'internal scratch']
  %s0 = inlined_call_operand.hbm [shape: f32[8,15808], index: 0, kind: input, shape index: {}]
  %s1 = inlined_call_operand.hbm [shape: f32[2,15808], index: 1, kind: input, shape index: {}]
  %s2 = inlined_call_operand.vmem [shape: f32[1,2], index: 2, kind: input, shape index: {}]
  %s3 = inlined_call_operand.vmem [shape: f32[8,2], index: 3, kind: output, shape index: {}]
  %s4 = sld [smem:[#allocation0]]
  $region30: #{f4_forward.1} parent=0
    _
  %s6 = ssub.s32 1, %s4
  %s7 = scalar_select 0, %s6, %s4
  $region1: #{f4_forward.1} parent=0
    #allocation2 [shape = 'u8[507904]{0}', space=vmem, size = 0x7c000, scoped, tag = 'input window, operand 0, single buffered']
    #allocation3 [shape = 's32[1]{0}', space=sflag, size = 0x4, scoped, tag = 'scoped memory for f4_forward.1']
    #allocation4 [shape = 'u8[126976]{0}', space=vmem, size = 0x1f000, scoped, tag = 'input window, operand 1, single buffered']
    #allocation5 [shape = 's32[1]{0}', space=sflag, size = 0x4, scoped, tag = 'scoped memory for f4_forward.1']
    %8 = vsyncpa [#allocation3], 0
    %9 = vsyncpa [#allocation5], 0
    // Predicated region
    $region2: #{f4_forward.1} parent=1 // pred_check
      _
    $region3: #{f4_forward.1} parent=1 // pred_check_branch
      %11 = sbr.rel (0) target = $region5
    $region4: #{f4_forward.1} parent=1 // pred_region
      %s13 = ssub.s32 15872, 15872
      %14 = vsyncadd [#allocation3], %s13
      %s16 = sshll.u32 [#allocation2], 4
      %s17 = int_to_ptr.vmem [resolvable:$true] %s16
      %19 = dma.hbm_to_vmem [thread:$0]  %s0, 15872, %s17, [#allocation3]
    $region5: #{f4_forward.1} parent=1 // pred_fallthru
      _
    // Predicated region
    $region6: #{f4_forward.1} parent=1 // pred_check
      _
    $region7: #{f4_forward.1} parent=1 // pred_check_branch
      %21 = sbr.rel (0) target = $region9
    $region8: #{f4_forward.1} parent=1 // pred_region
      %s23 = ssub.s32 3968, 3968
      %24 = vsyncadd [#allocation5], %s23
      %s26 = sshll.u32 [#allocation4], 4
      %s27 = int_to_ptr.vmem [resolvable:$true] %s26
      %29 = dma.hbm_to_vmem [thread:$0]  %s1, 3968, %s27, [#allocation5]
    $region9: #{f4_forward.1} parent=1 // pred_fallthru
      _
    // Predicated region
    $region10: #{f4_forward.1} parent=1 // pred_check
      _
    $region11: #{f4_forward.1} parent=1 // pred_check_branch
      %31 = sbr.rel (0) target = $region13
    $region12: #{f4_forward.1} parent=1 // pred_region
      _
    $region13: #{f4_forward.1} parent=1 // pred_fallthru
      _
    // Predicated region
    $region14: #{f4_forward.1} parent=1 // pred_check
      _
    $region15: #{f4_forward.1} parent=1 // pred_check_branch
      %33 = sbr.rel (0) target = $region17
    $region16: #{f4_forward.1} parent=1 // pred_region
      %34 = dma.done [#allocation3], 15872
    $region17: #{f4_forward.1} parent=1 // pred_fallthru
      _
    // Predicated region
    $region18: #{f4_forward.1} parent=1 // pred_check
      _
    $region19: #{f4_forward.1} parent=1 // pred_check_branch
      %36 = sbr.rel (0) target = $region21
    $region20: #{f4_forward.1} parent=1 // pred_region
      %37 = dma.done [#allocation5], 3968
    $region21: #{f4_forward.1} parent=1 // pred_fallthru
      _
    %v38 = vld [vmem:[#allocation2] sm:$0xff]
    %v39 = vld [vmem:[#allocation2 + $0x8] sm:$0xff]
    %v40 = vld [vmem:[#allocation2 + $0x10] sm:$0xff]
    %v41 = vld [vmem:[#allocation2 + $0x18] sm:$0xff]
    %v42 = vld [vmem:[#allocation2 + $0x20] sm:$0xff]
    %v43 = vld [vmem:[#allocation2 + $0x28] sm:$0xff]
    %v44 = vld [vmem:[#allocation2 + $0x30] sm:$0xff]
    %v45 = vld [vmem:[#allocation2 + $0x38] sm:$0xff]
    %v46 = vld [vmem:[#allocation2 + $0x40] sm:$0xff]
    %v47 = vld [vmem:[#allocation2 + $0x48] sm:$0xff]
    %v48 = vld [vmem:[#allocation2 + $0x50] sm:$0xff]
    %v49 = vld [vmem:[#allocation2 + $0x58] sm:$0xff]
    %v50 = vld [vmem:[#allocation2 + $0x60] sm:$0xff]
    %v51 = vld [vmem:[#allocation2 + $0x68] sm:$0xff]
    %v52 = vld [vmem:[#allocation2 + $0x70] sm:$0xff]
    %v53 = vld [vmem:[#allocation2 + $0x78] sm:$0xff]
    %v54 = vld [vmem:[#allocation2 + $0x80] sm:$0xff]
    %v55 = vld [vmem:[#allocation2 + $0x88] sm:$0xff]
    %v56 = vld [vmem:[#allocation2 + $0x90] sm:$0xff]
    %v57 = vld [vmem:[#allocation2 + $0x98] sm:$0xff]
    %v58 = vld [vmem:[#allocation2 + $0xa0] sm:$0xff]
    %v59 = vld [vmem:[#allocation2 + $0xa8] sm:$0xff]
    %v60 = vld [vmem:[#allocation2 + $0xb0] sm:$0xff]
    %v61 = vld [vmem:[#allocation2 + $0xb8] sm:$0xff]
    %v62 = vld [vmem:[#allocation2 + $0xc0] sm:$0xff]
    %v63 = vld [vmem:[#allocation2 + $0xc8] sm:$0xff]
    %v64 = vld [vmem:[#allocation2 + $0xd0] sm:$0xff]
    %v65 = vld [vmem:[#allocation2 + $0xd8] sm:$0xff]
    %v66 = vld [vmem:[#allocation2 + $0xe0] sm:$0xff]
    %v67 = vld [vmem:[#allocation2 + $0xe8] sm:$0xff]
    %v68 = vld [vmem:[#allocation2 + $0xf0] sm:$0xff]
    %v69 = vld [vmem:[#allocation2 + $0xf8] sm:$0xff]
    %v70 = vld [vmem:[#allocation2 + $0x100] sm:$0xff]
    %v71 = vld [vmem:[#allocation2 + $0x108] sm:$0xff]
    %v72 = vld [vmem:[#allocation2 + $0x110] sm:$0xff]
    %v73 = vld [vmem:[#allocation2 + $0x118] sm:$0xff]
    %v74 = vld [vmem:[#allocation2 + $0x120] sm:$0xff]
    %v75 = vld [vmem:[#allocation2 + $0x128] sm:$0xff]
    %v76 = vld [vmem:[#allocation2 + $0x130] sm:$0xff]
    %v77 = vld [vmem:[#allocation2 + $0x138] sm:$0xff]
    %v78 = vld [vmem:[#allocation2 + $0x140] sm:$0xff]
    %v79 = vld [vmem:[#allocation2 + $0x148] sm:$0xff]
    %v80 = vld [vmem:[#allocation2 + $0x150] sm:$0xff]
    %v81 = vld [vmem:[#allocation2 + $0x158] sm:$0xff]
    %v82 = vld [vmem:[#allocation2 + $0x160] sm:$0xff]
    %v83 = vld [vmem:[#allocation2 + $0x168] sm:$0xff]
    %v84 = vld [vmem:[#allocation2 + $0x170] sm:$0xff]
    %v85 = vld [vmem:[#allocation2 + $0x178] sm:$0xff]
    %v86 = vld [vmem:[#allocation2 + $0x180] sm:$0xff]
    %v87 = vld [vmem:[#allocation2 + $0x188] sm:$0xff]
    %v88 = vld [vmem:[#allocation2 + $0x190] sm:$0xff]
    %v89 = vld [vmem:[#allocation2 + $0x198] sm:$0xff]
    %v90 = vld [vmem:[#allocation2 + $0x1a0] sm:$0xff]
    %v91 = vld [vmem:[#allocation2 + $0x1a8] sm:$0xff]
    %v92 = vld [vmem:[#allocation2 + $0x1b0] sm:$0xff]
    %v93 = vld [vmem:[#allocation2 + $0x1b8] sm:$0xff]
    %v94 = vld [vmem:[#allocation2 + $0x1c0] sm:$0xff]
    %v95 = vld [vmem:[#allocation2 + $0x1c8] sm:$0xff]
    %v96 = vld [vmem:[#allocation2 + $0x1d0] sm:$0xff]
    %v97 = vld [vmem:[#allocation2 + $0x1d8] sm:$0xff]
    %v98 = vld [vmem:[#allocation2 + $0x1e0] sm:$0xff]
    %v99 = vld [vmem:[#allocation2 + $0x1e8] sm:$0xff]
    %v100 = vld [vmem:[#allocation2 + $0x1f0] sm:$0xff]
    %v101 = vld [vmem:[#allocation2 + $0x1f8] sm:$0xff]
    %v102 = vld [vmem:[#allocation2 + $0x200] sm:$0xff]
    %v103 = vld [vmem:[#allocation2 + $0x208] sm:$0xff]
    %v104 = vld [vmem:[#allocation2 + $0x210] sm:$0xff]
    %v105 = vld [vmem:[#allocation2 + $0x218] sm:$0xff]
    %v106 = vld [vmem:[#allocation2 + $0x220] sm:$0xff]
    %v107 = vld [vmem:[#allocation2 + $0x228] sm:$0xff]
    %v108 = vld [vmem:[#allocation2 + $0x230] sm:$0xff]
    %v109 = vld [vmem:[#allocation2 + $0x238] sm:$0xff]
    %v110 = vld [vmem:[#allocation2 + $0x240] sm:$0xff]
    %v111 = vld [vmem:[#allocation2 + $0x248] sm:$0xff]
    %v112 = vld [vmem:[#allocation2 + $0x250] sm:$0xff]
    %v113 = vld [vmem:[#allocation2 + $0x258] sm:$0xff]
    %v114 = vld [vmem:[#allocation2 + $0x260] sm:$0xff]
    %v115 = vld [vmem:[#allocation2 + $0x268] sm:$0xff]
    %v116 = vld [vmem:[#allocation2 + $0x270] sm:$0xff]
    %v117 = vld [vmem:[#allocation2 + $0x278] sm:$0xff]
    %v118 = vld [vmem:[#allocation2 + $0x280] sm:$0xff]
    %v119 = vld [vmem:[#allocation2 + $0x288] sm:$0xff]
    %v120 = vld [vmem:[#allocation2 + $0x290] sm:$0xff]
    %v121 = vld [vmem:[#allocation2 + $0x298] sm:$0xff]
    %v122 = vld [vmem:[#allocation2 + $0x2a0] sm:$0xff]
    %v123 = vld [vmem:[#allocation2 + $0x2a8] sm:$0xff]
    %v124 = vld [vmem:[#allocation2 + $0x2b0] sm:$0xff]
    %v125 = vld [vmem:[#allocation2 + $0x2b8] sm:$0xff]
    %v126 = vld [vmem:[#allocation2 + $0x2c0] sm:$0xff]
    %v127 = vld [vmem:[#allocation2 + $0x2c8] sm:$0xff]
    %v128 = vld [vmem:[#allocation2 + $0x2d0] sm:$0xff]
    %v129 = vld [vmem:[#allocation2 + $0x2d8] sm:$0xff]
    %v130 = vld [vmem:[#allocation2 + $0x2e0] sm:$0xff]
    %v131 = vld [vmem:[#allocation2 + $0x2e8] sm:$0xff]
    %v132 = vld [vmem:[#allocation2 + $0x2f0] sm:$0xff]
    %v133 = vld [vmem:[#allocation2 + $0x2f8] sm:$0xff]
    %v134 = vld [vmem:[#allocation2 + $0x300] sm:$0xff]
    %v135 = vld [vmem:[#allocation2 + $0x308] sm:$0xff]
    %v136 = vld [vmem:[#allocation2 + $0x310] sm:$0xff]
    %v137 = vld [vmem:[#allocation2 + $0x318] sm:$0xff]
    %v138 = vld [vmem:[#allocation2 + $0x320] sm:$0xff]
    %v139 = vld [vmem:[#allocation2 + $0x328] sm:$0xff]
    %v140 = vld [vmem:[#allocation2 + $0x330] sm:$0xff]
    %v141 = vld [vmem:[#allocation2 + $0x338] sm:$0xff]
    %v142 = vld [vmem:[#allocation2 + $0x340] sm:$0xff]
    %v143 = vld [vmem:[#allocation2 + $0x348] sm:$0xff]
    %v144 = vld [vmem:[#allocation2 + $0x350] sm:$0xff]
    %v145 = vld [vmem:[#allocation2 + $0x358] sm:$0xff]
    %v146 = vld [vmem:[#allocation2 + $0x360] sm:$0xff]
    %v147 = vld [vmem:[#allocation2 + $0x368] sm:$0xff]
    %v148 = vld [vmem:[#allocation2 + $0x370] sm:$0xff]
    %v149 = vld [vmem:[#allocation2 + $0x378] sm:$0xff]
    %v150 = vld [vmem:[#allocation2 + $0x380] sm:$0xff]
    %v151 = vld [vmem:[#allocation2 + $0x388] sm:$0xff]
    %v152 = vld [vmem:[#allocation2 + $0x390] sm:$0xff]
    %v153 = vld [vmem:[#allocation2 + $0x398] sm:$0xff]
    %v154 = vld [vmem:[#allocation2 + $0x3a0] sm:$0xff]
    %v155 = vld [vmem:[#allocation2 + $0x3a8] sm:$0xff]
    %v156 = vld [vmem:[#allocation2 + $0x3b0] sm:$0xff]
    %v157 = vld [vmem:[#allocation2 + $0x3b8] sm:$0xff]
    %v158 = vld [vmem:[#allocation2 + $0x3c0] sm:$0xff]
    %v159 = vld [vmem:[#allocation2 + $0x3c8] sm:$0xff]
    %v160 = vld [vmem:[#allocation2 + $0x3d0] sm:$0xff]
    %v161 = vld [vmem:[#allocation2 + $0x3d8] sm:$0xff]
    %v162 = vld [vmem:[#allocation4] sm:$0xff]
    %v163 = vld [vmem:[#allocation4 + $0x8] sm:$0xff]
    %v164 = vld [vmem:[#allocation4 + $0x10] sm:$0xff]
    %v165 = vld [vmem:[#allocation4 + $0x18] sm:$0xff]
    %v166 = vld [vmem:[#allocation4 + $0x20] sm:$0xff]
    %v167 = vld [vmem:[#allocation4 + $0x28] sm:$0xff]
    %v168 = vld [vmem:[#allocation4 + $0x30] sm:$0xff]
    %v169 = vld [vmem:[#allocation4 + $0x38] sm:$0xff]
    %v170 = vld [vmem:[#allocation4 + $0x40] sm:$0xff]
    %v171 = vld [vmem:[#allocation4 + $0x48] sm:$0xff]
    %v172 = vld [vmem:[#allocation4 + $0x50] sm:$0xff]
    %v173 = vld [vmem:[#allocation4 + $0x58] sm:$0xff]
    %v174 = vld [vmem:[#allocation4 + $0x60] sm:$0xff]
    %v175 = vld [vmem:[#allocation4 + $0x68] sm:$0xff]
    %v176 = vld [vmem:[#allocation4 + $0x70] sm:$0xff]
    %v177 = vld [vmem:[#allocation4 + $0x78] sm:$0xff]
    %v178 = vld [vmem:[#allocation4 + $0x80] sm:$0xff]
    %v179 = vld [vmem:[#allocation4 + $0x88] sm:$0xff]
    %v180 = vld [vmem:[#allocation4 + $0x90] sm:$0xff]
    %v181 = vld [vmem:[#allocation4 + $0x98] sm:$0xff]
    %v182 = vld [vmem:[#allocation4 + $0xa0] sm:$0xff]
    %v183 = vld [vmem:[#allocation4 + $0xa8] sm:$0xff]
    %v184 = vld [vmem:[#allocation4 + $0xb0] sm:$0xff]
    %v185 = vld [vmem:[#allocation4 + $0xb8] sm:$0xff]
    %v186 = vld [vmem:[#allocation4 + $0xc0] sm:$0xff]
    %v187 = vld [vmem:[#allocation4 + $0xc8] sm:$0xff]
    %v188 = vld [vmem:[#allocation4 + $0xd0] sm:$0xff]
    %v189 = vld [vmem:[#allocation4 + $0xd8] sm:$0xff]
    %v190 = vld [vmem:[#allocation4 + $0xe0] sm:$0xff]
    %v191 = vld [vmem:[#allocation4 + $0xe8] sm:$0xff]
    %v192 = vld [vmem:[#allocation4 + $0xf0] sm:$0xff]
    %v224 = vlaneseq
    %v225 = vshrl.u32 %v224, 7
    %v226 = vsub.s32 0, %v225
    %v227 = vrot.slane %v162, %v226
    %v228 = vlaneseq
    %v229 = vshrl.u32 %v228, 7
    %v230 = vsub.s32 2, %v229
    %v231 = vrot.slane %v162, %v230
    %v232 = vlaneseq
    %v233 = vshrl.u32 %v232, 7
    %v234 = vsub.s32 4, %v233
    %v235 = vrot.slane %v162, %v234
    %v236 = vlaneseq
    %v237 = vshrl.u32 %v236, 7
    %v238 = vsub.s32 6, %v237
    %v239 = vrot.slane %v162, %v238
    %v240 = vlaneseq
    %v241 = vshrl.u32 %v240, 7
    %v242 = vsub.s32 0, %v241
    %v243 = vrot.slane %v163, %v242
    %v244 = vlaneseq
    %v245 = vshrl.u32 %v244, 7
    %v246 = vsub.s32 2, %v245
    %v247 = vrot.slane %v163, %v246
    %v248 = vlaneseq
    %v249 = vshrl.u32 %v248, 7
    %v250 = vsub.s32 4, %v249
    %v251 = vrot.slane %v163, %v250
    %v252 = vlaneseq
    %v253 = vshrl.u32 %v252, 7
    %v254 = vsub.s32 6, %v253
    %v255 = vrot.slane %v163, %v254
    %v256 = vlaneseq
    %v257 = vshrl.u32 %v256, 7
    %v258 = vsub.s32 0, %v257
    %v259 = vrot.slane %v164, %v258
    %v260 = vlaneseq
    %v261 = vshrl.u32 %v260, 7
    %v262 = vsub.s32 2, %v261
    %v263 = vrot.slane %v164, %v262
    %v264 = vlaneseq
    %v265 = vshrl.u32 %v264, 7
    %v266 = vsub.s32 4, %v265
    %v267 = vrot.slane %v164, %v266
    %v268 = vlaneseq
    %v269 = vshrl.u32 %v268, 7
    %v270 = vsub.s32 6, %v269
    %v271 = vrot.slane %v164, %v270
    %v272 = vlaneseq
    %v273 = vshrl.u32 %v272, 7
    %v274 = vsub.s32 0, %v273
    %v275 = vrot.slane %v165, %v274
    %v276 = vlaneseq
    %v277 = vshrl.u32 %v276, 7
    %v278 = vsub.s32 2, %v277
    %v279 = vrot.slane %v165, %v278
    %v280 = vlaneseq
    %v281 = vshrl.u32 %v280, 7
    %v282 = vsub.s32 4, %v281
    %v283 = vrot.slane %v165, %v282
    %v284 = vlaneseq
    %v285 = vshrl.u32 %v284, 7
    %v286 = vsub.s32 6, %v285
    %v287 = vrot.slane %v165, %v286
    %v288 = vlaneseq
    %v289 = vshrl.u32 %v288, 7
    %v290 = vsub.s32 0, %v289
    %v291 = vrot.slane %v166, %v290
    %v292 = vlaneseq
    %v293 = vshrl.u32 %v292, 7
    %v294 = vsub.s32 2, %v293
    %v295 = vrot.slane %v166, %v294
    %v296 = vlaneseq
    %v297 = vshrl.u32 %v296, 7
    %v298 = vsub.s32 4, %v297
    %v299 = vrot.slane %v166, %v298
    %v300 = vlaneseq
    %v301 = vshrl.u32 %v300, 7
    %v302 = vsub.s32 6, %v301
    %v303 = vrot.slane %v166, %v302
    %v304 = vlaneseq
    %v305 = vshrl.u32 %v304, 7
    %v306 = vsub.s32 0, %v305
    %v307 = vrot.slane %v167, %v306
    %v308 = vlaneseq
    %v309 = vshrl.u32 %v308, 7
    %v310 = vsub.s32 2, %v309
    %v311 = vrot.slane %v167, %v310
    %v312 = vlaneseq
    %v313 = vshrl.u32 %v312, 7
    %v314 = vsub.s32 4, %v313
    %v315 = vrot.slane %v167, %v314
    %v316 = vlaneseq
    %v317 = vshrl.u32 %v316, 7
    %v318 = vsub.s32 6, %v317
    %v319 = vrot.slane %v167, %v318
    %v320 = vlaneseq
    %v321 = vshrl.u32 %v320, 7
    %v322 = vsub.s32 0, %v321
    %v323 = vrot.slane %v168, %v322
    %v324 = vlaneseq
    %v325 = vshrl.u32 %v324, 7
    %v326 = vsub.s32 2, %v325
    %v327 = vrot.slane %v168, %v326
    %v328 = vlaneseq
    %v329 = vshrl.u32 %v328, 7
    %v330 = vsub.s32 4, %v329
    %v331 = vrot.slane %v168, %v330
    %v332 = vlaneseq
    %v333 = vshrl.u32 %v332, 7
    %v334 = vsub.s32 6, %v333
    %v335 = vrot.slane %v168, %v334
    %v336 = vlaneseq
    %v337 = vshrl.u32 %v336, 7
    %v338 = vsub.s32 0, %v337
    %v339 = vrot.slane %v169, %v338
    %v340 = vlaneseq
    %v341 = vshrl.u32 %v340, 7
    %v342 = vsub.s32 2, %v341
    %v343 = vrot.slane %v169, %v342
    %v344 = vlaneseq
    %v345 = vshrl.u32 %v344, 7
    %v346 = vsub.s32 4, %v345
    %v347 = vrot.slane %v169, %v346
    %v348 = vlaneseq
    %v349 = vshrl.u32 %v348, 7
    %v350 = vsub.s32 6, %v349
    %v351 = vrot.slane %v169, %v350
    %v352 = vlaneseq
    %v353 = vshrl.u32 %v352, 7
    %v354 = vsub.s32 0, %v353
    %v355 = vrot.slane %v170, %v354
    %v356 = vlaneseq
    %v357 = vshrl.u32 %v356, 7
    %v358 = vsub.s32 2, %v357
    %v359 = vrot.slane %v170, %v358
    %v360 = vlaneseq
    %v361 = vshrl.u32 %v360, 7
    %v362 = vsub.s32 4, %v361
    %v363 = vrot.slane %v170, %v362
    %v364 = vlaneseq
    %v365 = vshrl.u32 %v364, 7
    %v366 = vsub.s32 6, %v365
    %v367 = vrot.slane %v170, %v366
    %v368 = vlaneseq
    %v369 = vshrl.u32 %v368, 7
    %v370 = vsub.s32 0, %v369
    %v371 = vrot.slane %v171, %v370
    %v372 = vlaneseq
    %v373 = vshrl.u32 %v372, 7
    %v374 = vsub.s32 2, %v373
    %v375 = vrot.slane %v171, %v374
    %v376 = vlaneseq
    %v377 = vshrl.u32 %v376, 7
    %v378 = vsub.s32 4, %v377
    %v379 = vrot.slane %v171, %v378
    %v380 = vlaneseq
    %v381 = vshrl.u32 %v380, 7
    %v382 = vsub.s32 6, %v381
    %v383 = vrot.slane %v171, %v382
    %v384 = vlaneseq
    %v385 = vshrl.u32 %v384, 7
    %v386 = vsub.s32 0, %v385
    %v387 = vrot.slane %v172, %v386
    %v388 = vlaneseq
    %v389 = vshrl.u32 %v388, 7
    %v390 = vsub.s32 2, %v389
    %v391 = vrot.slane %v172, %v390
    %v392 = vlaneseq
    %v393 = vshrl.u32 %v392, 7
    %v394 = vsub.s32 4, %v393
    %v395 = vrot.slane %v172, %v394
    %v396 = vlaneseq
    %v397 = vshrl.u32 %v396, 7
    %v398 = vsub.s32 6, %v397
    %v399 = vrot.slane %v172, %v398
    %v400 = vlaneseq
    %v401 = vshrl.u32 %v400, 7
    %v402 = vsub.s32 0, %v401
    %v403 = vrot.slane %v173, %v402
    %v404 = vlaneseq
    %v405 = vshrl.u32 %v404, 7
    %v406 = vsub.s32 2, %v405
    %v407 = vrot.slane %v173, %v406
    %v408 = vlaneseq
    %v409 = vshrl.u32 %v408, 7
    %v410 = vsub.s32 4, %v409
    %v411 = vrot.slane %v173, %v410
    %v412 = vlaneseq
    %v413 = vshrl.u32 %v412, 7
    %v414 = vsub.s32 6, %v413
    %v415 = vrot.slane %v173, %v414
    %v416 = vlaneseq
    %v417 = vshrl.u32 %v416, 7
    %v418 = vsub.s32 0, %v417
    %v419 = vrot.slane %v174, %v418
    %v420 = vlaneseq
    %v421 = vshrl.u32 %v420, 7
    %v422 = vsub.s32 2, %v421
    %v423 = vrot.slane %v174, %v422
    %v424 = vlaneseq
    %v425 = vshrl.u32 %v424, 7
    %v426 = vsub.s32 4, %v425
    %v427 = vrot.slane %v174, %v426
    %v428 = vlaneseq
    %v429 = vshrl.u32 %v428, 7
    %v430 = vsub.s32 6, %v429
    %v431 = vrot.slane %v174, %v430
    %v432 = vlaneseq
    %v433 = vshrl.u32 %v432, 7
    %v434 = vsub.s32 0, %v433
    %v435 = vrot.slane %v175, %v434
    %v436 = vlaneseq
    %v437 = vshrl.u32 %v436, 7
    %v438 = vsub.s32 2, %v437
    %v439 = vrot.slane %v175, %v438
    %v440 = vlaneseq
    %v441 = vshrl.u32 %v440, 7
    %v442 = vsub.s32 4, %v441
    %v443 = vrot.slane %v175, %v442
    %v444 = vlaneseq
    %v445 = vshrl.u32 %v444, 7
    %v446 = vsub.s32 6, %v445
    %v447 = vrot.slane %v175, %v446
    %v448 = vlaneseq
    %v449 = vshrl.u32 %v448, 7
    %v450 = vsub.s32 0, %v449
    %v451 = vrot.slane %v176, %v450
    %v452 = vlaneseq
    %v453 = vshrl.u32 %v452, 7
    %v454 = vsub.s32 2, %v453
    %v455 = vrot.slane %v176, %v454
    %v456 = vlaneseq
    %v457 = vshrl.u32 %v456, 7
    %v458 = vsub.s32 4, %v457
    %v459 = vrot.slane %v176, %v458
    %v460 = vlaneseq
    %v461 = vshrl.u32 %v460, 7
    %v462 = vsub.s32 6, %v461
    %v463 = vrot.slane %v176, %v462
    %v464 = vlaneseq
    %v465 = vshrl.u32 %v464, 7
    %v466 = vsub.s32 0, %v465
    %v467 = vrot.slane %v177, %v466
    %v468 = vlaneseq
    %v469 = vshrl.u32 %v468, 7
    %v470 = vsub.s32 2, %v469
    %v471 = vrot.slane %v177, %v470
    %v472 = vlaneseq
    %v473 = vshrl.u32 %v472, 7
    %v474 = vsub.s32 4, %v473
    %v475 = vrot.slane %v177, %v474
    %v476 = vlaneseq
    %v477 = vshrl.u32 %v476, 7
    %v478 = vsub.s32 6, %v477
    %v479 = vrot.slane %v177, %v478
    %v480 = vlaneseq
    %v481 = vshrl.u32 %v480, 7
    %v482 = vsub.s32 0, %v481
    %v483 = vrot.slane %v178, %v482
    %v484 = vlaneseq
    %v485 = vshrl.u32 %v484, 7
    %v486 = vsub.s32 2, %v485
    %v487 = vrot.slane %v178, %v486
    %v488 = vlaneseq
    %v489 = vshrl.u32 %v488, 7
    %v490 = vsub.s32 4, %v489
    %v491 = vrot.slane %v178, %v490
    %v492 = vlaneseq
    %v493 = vshrl.u32 %v492, 7
    %v494 = vsub.s32 6, %v493
    %v495 = vrot.slane %v178, %v494
    %v496 = vlaneseq
    %v497 = vshrl.u32 %v496, 7
    %v498 = vsub.s32 0, %v497
    %v499 = vrot.slane %v179, %v498
    %v500 = vlaneseq
    %v501 = vshrl.u32 %v500, 7
    %v502 = vsub.s32 2, %v501
    %v503 = vrot.slane %v179, %v502
    %v504 = vlaneseq
    %v505 = vshrl.u32 %v504, 7
    %v506 = vsub.s32 4, %v505
    %v507 = vrot.slane %v179, %v506
    %v508 = vlaneseq
    %v509 = vshrl.u32 %v508, 7
    %v510 = vsub.s32 6, %v509
    %v511 = vrot.slane %v179, %v510
    %v512 = vlaneseq
    %v513 = vshrl.u32 %v512, 7
    %v514 = vsub.s32 0, %v513
    %v515 = vrot.slane %v180, %v514
    %v516 = vlaneseq
    %v517 = vshrl.u32 %v516, 7
    %v518 = vsub.s32 2, %v517
    %v519 = vrot.slane %v180, %v518
    %v520 = vlaneseq
    %v521 = vshrl.u32 %v520, 7
    %v522 = vsub.s32 4, %v521
    %v523 = vrot.slane %v180, %v522
    %v524 = vlaneseq
    %v525 = vshrl.u32 %v524, 7
    %v526 = vsub.s32 6, %v525
    %v527 = vrot.slane %v180, %v526
    %v528 = vlaneseq
    %v529 = vshrl.u32 %v528, 7
    %v530 = vsub.s32 0, %v529
    %v531 = vrot.slane %v181, %v530
    %v532 = vlaneseq
    %v533 = vshrl.u32 %v532, 7
    %v534 = vsub.s32 2, %v533
    %v535 = vrot.slane %v181, %v534
    %v536 = vlaneseq
    %v537 = vshrl.u32 %v536, 7
    %v538 = vsub.s32 4, %v537
    %v539 = vrot.slane %v181, %v538
    %v540 = vlaneseq
    %v541 = vshrl.u32 %v540, 7
    %v542 = vsub.s32 6, %v541
    %v543 = vrot.slane %v181, %v542
    %v544 = vlaneseq
    %v545 = vshrl.u32 %v544, 7
    %v546 = vsub.s32 0, %v545
    %v547 = vrot.slane %v182, %v546
    %v548 = vlaneseq
    %v549 = vshrl.u32 %v548, 7
    %v550 = vsub.s32 2, %v549
    %v551 = vrot.slane %v182, %v550
    %v552 = vlaneseq
    %v553 = vshrl.u32 %v552, 7
    %v554 = vsub.s32 4, %v553
    %v555 = vrot.slane %v182, %v554
    %v556 = vlaneseq
    %v557 = vshrl.u32 %v556, 7
    %v558 = vsub.s32 6, %v557
    %v559 = vrot.slane %v182, %v558
    %v560 = vlaneseq
    %v561 = vshrl.u32 %v560, 7
    %v562 = vsub.s32 0, %v561
    %v563 = vrot.slane %v183, %v562
    %v564 = vlaneseq
    %v565 = vshrl.u32 %v564, 7
    %v566 = vsub.s32 2, %v565
    %v567 = vrot.slane %v183, %v566
    %v568 = vlaneseq
    %v569 = vshrl.u32 %v568, 7
    %v570 = vsub.s32 4, %v569
    %v571 = vrot.slane %v183, %v570
    %v572 = vlaneseq
    %v573 = vshrl.u32 %v572, 7
    %v574 = vsub.s32 6, %v573
    %v575 = vrot.slane %v183, %v574
    %v576 = vlaneseq
    %v577 = vshrl.u32 %v576, 7
    %v578 = vsub.s32 0, %v577
    %v579 = vrot.slane %v184, %v578
    %v580 = vlaneseq
    %v581 = vshrl.u32 %v580, 7
    %v582 = vsub.s32 2, %v581
    %v583 = vrot.slane %v184, %v582
    %v584 = vlaneseq
    %v585 = vshrl.u32 %v584, 7
    %v586 = vsub.s32 4, %v585
    %v587 = vrot.slane %v184, %v586
    %v588 = vlaneseq
    %v589 = vshrl.u32 %v588, 7
    %v590 = vsub.s32 6, %v589
    %v591 = vrot.slane %v184, %v590
    %v592 = vlaneseq
    %v593 = vshrl.u32 %v592, 7
    %v594 = vsub.s32 0, %v593
    %v595 = vrot.slane %v185, %v594
    %v596 = vlaneseq
    %v597 = vshrl.u32 %v596, 7
    %v598 = vsub.s32 2, %v597
    %v599 = vrot.slane %v185, %v598
    %v600 = vlaneseq
    %v601 = vshrl.u32 %v600, 7
    %v602 = vsub.s32 4, %v601
    %v603 = vrot.slane %v185, %v602
    %v604 = vlaneseq
    %v605 = vshrl.u32 %v604, 7
    %v606 = vsub.s32 6, %v605
    %v607 = vrot.slane %v185, %v606
    %v608 = vlaneseq
    %v609 = vshrl.u32 %v608, 7
    %v610 = vsub.s32 0, %v609
    %v611 = vrot.slane %v186, %v610
    %v612 = vlaneseq
    %v613 = vshrl.u32 %v612, 7
    %v614 = vsub.s32 2, %v613
    %v615 = vrot.slane %v186, %v614
    %v616 = vlaneseq
    %v617 = vshrl.u32 %v616, 7
    %v618 = vsub.s32 4, %v617
    %v619 = vrot.slane %v186, %v618
    %v620 = vlaneseq
    %v621 = vshrl.u32 %v620, 7
    %v622 = vsub.s32 6, %v621
    %v623 = vrot.slane %v186, %v622
    %v624 = vlaneseq
    %v625 = vshrl.u32 %v624, 7
    %v626 = vsub.s32 0, %v625
    %v627 = vrot.slane %v187, %v626
    %v628 = vlaneseq
    %v629 = vshrl.u32 %v628, 7
    %v630 = vsub.s32 2, %v629
    %v631 = vrot.slane %v187, %v630
    %v632 = vlaneseq
    %v633 = vshrl.u32 %v632, 7
    %v634 = vsub.s32 4, %v633
    %v635 = vrot.slane %v187, %v634
    %v636 = vlaneseq
    %v637 = vshrl.u32 %v636, 7
    %v638 = vsub.s32 6, %v637
    %v639 = vrot.slane %v187, %v638
    %v640 = vlaneseq
    %v641 = vshrl.u32 %v640, 7
    %v642 = vsub.s32 0, %v641
    %v643 = vrot.slane %v188, %v642
    %v644 = vlaneseq
    %v645 = vshrl.u32 %v644, 7
    %v646 = vsub.s32 2, %v645
    %v647 = vrot.slane %v188, %v646
    %v648 = vlaneseq
    %v649 = vshrl.u32 %v648, 7
    %v650 = vsub.s32 4, %v649
    %v651 = vrot.slane %v188, %v650
    %v652 = vlaneseq
    %v653 = vshrl.u32 %v652, 7
    %v654 = vsub.s32 6, %v653
    %v655 = vrot.slane %v188, %v654
    %v656 = vlaneseq
    %v657 = vshrl.u32 %v656, 7
    %v658 = vsub.s32 0, %v657
    %v659 = vrot.slane %v189, %v658
    %v660 = vlaneseq
    %v661 = vshrl.u32 %v660, 7
    %v662 = vsub.s32 2, %v661
    %v663 = vrot.slane %v189, %v662
    %v664 = vlaneseq
    %v665 = vshrl.u32 %v664, 7
    %v666 = vsub.s32 4, %v665
    %v667 = vrot.slane %v189, %v666
    %v668 = vlaneseq
    %v669 = vshrl.u32 %v668, 7
    %v670 = vsub.s32 6, %v669
    %v671 = vrot.slane %v189, %v670
    %v672 = vlaneseq
    %v673 = vshrl.u32 %v672, 7
    %v674 = vsub.s32 0, %v673
    %v675 = vrot.slane %v190, %v674
    %v676 = vlaneseq
    %v677 = vshrl.u32 %v676, 7
    %v678 = vsub.s32 2, %v677
    %v679 = vrot.slane %v190, %v678
    %v680 = vlaneseq
    %v681 = vshrl.u32 %v680, 7
    %v682 = vsub.s32 4, %v681
    %v683 = vrot.slane %v190, %v682
    %v684 = vlaneseq
    %v685 = vshrl.u32 %v684, 7
    %v686 = vsub.s32 6, %v685
    %v687 = vrot.slane %v190, %v686
    %v688 = vlaneseq
    %v689 = vshrl.u32 %v688, 7
    %v690 = vsub.s32 0, %v689
    %v691 = vrot.slane %v191, %v690
    %v692 = vlaneseq
    %v693 = vshrl.u32 %v692, 7
    %v694 = vsub.s32 2, %v693
    %v695 = vrot.slane %v191, %v694
    %v696 = vlaneseq
    %v697 = vshrl.u32 %v696, 7
    %v698 = vsub.s32 4, %v697
    %v699 = vrot.slane %v191, %v698
    %v700 = vlaneseq
    %v701 = vshrl.u32 %v700, 7
    %v702 = vsub.s32 6, %v701
    %v703 = vrot.slane %v191, %v702
    %v704 = vlaneseq
    %v705 = vshrl.u32 %v704, 7
    %v706 = vsub.s32 0, %v705
    %v707 = vrot.slane %v192, %v706
    %v708 = vlaneseq
    %v709 = vshrl.u32 %v708, 7
    %v710 = vsub.s32 2, %v709
    %v711 = vrot.slane %v192, %v710
    %v712 = vlaneseq
    %v713 = vshrl.u32 %v712, 7
    %v714 = vsub.s32 4, %v713
    %v715 = vrot.slane %v192, %v714
    %v716 = vlaneseq
    %v717 = vshrl.u32 %v716, 7
    %v718 = vsub.s32 6, %v717
    %v719 = vrot.slane %v192, %v718
    %v844 = vlaneseq
    %v845 = vshrl.u32 %v844, 7
    %v846 = vsub.s32 0, %v845
    %v847 = vrot.slane %v227, %v846
    %v848 = vlaneseq
    %v849 = vshrl.u32 %v848, 7
    %v850 = vsub.s32 0, %v849
    %v851 = vrot.slane %v231, %v850
    %v852 = vlaneseq
    %v853 = vshrl.u32 %v852, 7
    %v854 = vsub.s32 0, %v853
    %v855 = vrot.slane %v235, %v854
    %v856 = vlaneseq
    %v857 = vshrl.u32 %v856, 7
    %v858 = vsub.s32 0, %v857
    %v859 = vrot.slane %v239, %v858
    %v860 = vlaneseq
    %v861 = vshrl.u32 %v860, 7
    %v862 = vsub.s32 0, %v861
    %v863 = vrot.slane %v243, %v862
    %v864 = vlaneseq
    %v865 = vshrl.u32 %v864, 7
    %v866 = vsub.s32 0, %v865
    %v867 = vrot.slane %v247, %v866
    %v868 = vlaneseq
    %v869 = vshrl.u32 %v868, 7
    %v870 = vsub.s32 0, %v869
    %v871 = vrot.slane %v251, %v870
    %v872 = vlaneseq
    %v873 = vshrl.u32 %v872, 7
    %v874 = vsub.s32 0, %v873
    %v875 = vrot.slane %v255, %v874
    %v876 = vlaneseq
    %v877 = vshrl.u32 %v876, 7
    %v878 = vsub.s32 0, %v877
    %v879 = vrot.slane %v259, %v878
    %v880 = vlaneseq
    %v881 = vshrl.u32 %v880, 7
    %v882 = vsub.s32 0, %v881
    %v883 = vrot.slane %v263, %v882
    %v884 = vlaneseq
    %v885 = vshrl.u32 %v884, 7
    %v886 = vsub.s32 0, %v885
    %v887 = vrot.slane %v267, %v886
    %v888 = vlaneseq
    %v889 = vshrl.u32 %v888, 7
    %v890 = vsub.s32 0, %v889
    %v891 = vrot.slane %v271, %v890
    %v892 = vlaneseq
    %v893 = vshrl.u32 %v892, 7
    %v894 = vsub.s32 0, %v893
    %v895 = vrot.slane %v275, %v894
    %v896 = vlaneseq
    %v897 = vshrl.u32 %v896, 7
    %v898 = vsub.s32 0, %v897
    %v899 = vrot.slane %v279, %v898
    %v900 = vlaneseq
    %v901 = vshrl.u32 %v900, 7
    %v902 = vsub.s32 0, %v901
    %v903 = vrot.slane %v283, %v902
    %v904 = vlaneseq
    %v905 = vshrl.u32 %v904, 7
    %v906 = vsub.s32 0, %v905
    %v907 = vrot.slane %v287, %v906
    %v908 = vlaneseq
    %v909 = vshrl.u32 %v908, 7
    %v910 = vsub.s32 0, %v909
    %v911 = vrot.slane %v291, %v910
    %v912 = vlaneseq
    %v913 = vshrl.u32 %v912, 7
    %v914 = vsub.s32 0, %v913
    %v915 = vrot.slane %v295, %v914
    %v916 = vlaneseq
    %v917 = vshrl.u32 %v916, 7
    %v918 = vsub.s32 0, %v917
    %v919 = vrot.slane %v299, %v918
    %v920 = vlaneseq
    %v921 = vshrl.u32 %v920, 7
    %v922 = vsub.s32 0, %v921
    %v923 = vrot.slane %v303, %v922
    %v924 = vlaneseq
    %v925 = vshrl.u32 %v924, 7
    %v926 = vsub.s32 0, %v925
    %v927 = vrot.slane %v307, %v926
    %v928 = vlaneseq
    %v929 = vshrl.u32 %v928, 7
    %v930 = vsub.s32 0, %v929
    %v931 = vrot.slane %v311, %v930
    %v932 = vlaneseq
    %v933 = vshrl.u32 %v932, 7
    %v934 = vsub.s32 0, %v933
    %v935 = vrot.slane %v315, %v934
    %v936 = vlaneseq
    %v937 = vshrl.u32 %v936, 7
    %v938 = vsub.s32 0, %v937
    %v939 = vrot.slane %v319, %v938
    %v940 = vlaneseq
    %v941 = vshrl.u32 %v940, 7
    %v942 = vsub.s32 0, %v941
    %v943 = vrot.slane %v323, %v942
    %v944 = vlaneseq
    %v945 = vshrl.u32 %v944, 7
    %v946 = vsub.s32 0, %v945
    %v947 = vrot.slane %v327, %v946
    %v948 = vlaneseq
    %v949 = vshrl.u32 %v948, 7
    %v950 = vsub.s32 0, %v949
    %v951 = vrot.slane %v331, %v950
    %v952 = vlaneseq
    %v953 = vshrl.u32 %v952, 7
    %v954 = vsub.s32 0, %v953
    %v955 = vrot.slane %v335, %v954
    %v956 = vlaneseq
    %v957 = vshrl.u32 %v956, 7
    %v958 = vsub.s32 0, %v957
    %v959 = vrot.slane %v339, %v958
    %v960 = vlaneseq
    %v961 = vshrl.u32 %v960, 7
    %v962 = vsub.s32 0, %v961
    %v963 = vrot.slane %v343, %v962
    %v964 = vlaneseq
    %v965 = vshrl.u32 %v964, 7
    %v966 = vsub.s32 0, %v965
    %v967 = vrot.slane %v347, %v966
    %v968 = vlaneseq
    %v969 = vshrl.u32 %v968, 7
    %v970 = vsub.s32 0, %v969
    %v971 = vrot.slane %v351, %v970
    %v972 = vlaneseq
    %v973 = vshrl.u32 %v972, 7
    %v974 = vsub.s32 0, %v973
    %v975 = vrot.slane %v355, %v974
    %v976 = vlaneseq
    %v977 = vshrl.u32 %v976, 7
    %v978 = vsub.s32 0, %v977
    %v979 = vrot.slane %v359, %v978
    %v980 = vlaneseq
    %v981 = vshrl.u32 %v980, 7
    %v982 = vsub.s32 0, %v981
    %v983 = vrot.slane %v363, %v982
    %v984 = vlaneseq
    %v985 = vshrl.u32 %v984, 7
    %v986 = vsub.s32 0, %v985
    %v987 = vrot.slane %v367, %v986
    %v988 = vlaneseq
    %v989 = vshrl.u32 %v988, 7
    %v990 = vsub.s32 0, %v989
    %v991 = vrot.slane %v371, %v990
    %v992 = vlaneseq
    %v993 = vshrl.u32 %v992, 7
    %v994 = vsub.s32 0, %v993
    %v995 = vrot.slane %v375, %v994
    %v996 = vlaneseq
    %v997 = vshrl.u32 %v996, 7
    %v998 = vsub.s32 0, %v997
    %v999 = vrot.slane %v379, %v998
    %v1000 = vlaneseq
    %v1001 = vshrl.u32 %v1000, 7
    %v1002 = vsub.s32 0, %v1001
    %v1003 = vrot.slane %v383, %v1002
    %v1004 = vlaneseq
    %v1005 = vshrl.u32 %v1004, 7
    %v1006 = vsub.s32 0, %v1005
    %v1007 = vrot.slane %v387, %v1006
    %v1008 = vlaneseq
    %v1009 = vshrl.u32 %v1008, 7
    %v1010 = vsub.s32 0, %v1009
    %v1011 = vrot.slane %v391, %v1010
    %v1012 = vlaneseq
    %v1013 = vshrl.u32 %v1012, 7
    %v1014 = vsub.s32 0, %v1013
    %v1015 = vrot.slane %v395, %v1014
    %v1016 = vlaneseq
    %v1017 = vshrl.u32 %v1016, 7
    %v1018 = vsub.s32 0, %v1017
    %v1019 = vrot.slane %v399, %v1018
    %v1020 = vlaneseq
    %v1021 = vshrl.u32 %v1020, 7
    %v1022 = vsub.s32 0, %v1021
    %v1023 = vrot.slane %v403, %v1022
    %v1024 = vlaneseq
    %v1025 = vshrl.u32 %v1024, 7
    %v1026 = vsub.s32 0, %v1025
    %v1027 = vrot.slane %v407, %v1026
    %v1028 = vlaneseq
    %v1029 = vshrl.u32 %v1028, 7
    %v1030 = vsub.s32 0, %v1029
    %v1031 = vrot.slane %v411, %v1030
    %v1032 = vlaneseq
    %v1033 = vshrl.u32 %v1032, 7
    %v1034 = vsub.s32 0, %v1033
    %v1035 = vrot.slane %v415, %v1034
    %v1036 = vlaneseq
    %v1037 = vshrl.u32 %v1036, 7
    %v1038 = vsub.s32 0, %v1037
    %v1039 = vrot.slane %v419, %v1038
    %v1040 = vlaneseq
    %v1041 = vshrl.u32 %v1040, 7
    %v1042 = vsub.s32 0, %v1041
    %v1043 = vrot.slane %v423, %v1042
    %v1044 = vlaneseq
    %v1045 = vshrl.u32 %v1044, 7
    %v1046 = vsub.s32 0, %v1045
    %v1047 = vrot.slane %v427, %v1046
    %v1048 = vlaneseq
    %v1049 = vshrl.u32 %v1048, 7
    %v1050 = vsub.s32 0, %v1049
    %v1051 = vrot.slane %v431, %v1050
    %v1052 = vlaneseq
    %v1053 = vshrl.u32 %v1052, 7
    %v1054 = vsub.s32 0, %v1053
    %v1055 = vrot.slane %v435, %v1054
    %v1056 = vlaneseq
    %v1057 = vshrl.u32 %v1056, 7
    %v1058 = vsub.s32 0, %v1057
    %v1059 = vrot.slane %v439, %v1058
    %v1060 = vlaneseq
    %v1061 = vshrl.u32 %v1060, 7
    %v1062 = vsub.s32 0, %v1061
    %v1063 = vrot.slane %v443, %v1062
    %v1064 = vlaneseq
    %v1065 = vshrl.u32 %v1064, 7
    %v1066 = vsub.s32 0, %v1065
    %v1067 = vrot.slane %v447, %v1066
    %v1068 = vlaneseq
    %v1069 = vshrl.u32 %v1068, 7
    %v1070 = vsub.s32 0, %v1069
    %v1071 = vrot.slane %v451, %v1070
    %v1072 = vlaneseq
    %v1073 = vshrl.u32 %v1072, 7
    %v1074 = vsub.s32 0, %v1073
    %v1075 = vrot.slane %v455, %v1074
    %v1076 = vlaneseq
    %v1077 = vshrl.u32 %v1076, 7
    %v1078 = vsub.s32 0, %v1077
    %v1079 = vrot.slane %v459, %v1078
    %v1080 = vlaneseq
    %v1081 = vshrl.u32 %v1080, 7
    %v1082 = vsub.s32 0, %v1081
    %v1083 = vrot.slane %v463, %v1082
    %v1084 = vlaneseq
    %v1085 = vshrl.u32 %v1084, 7
    %v1086 = vsub.s32 0, %v1085
    %v1087 = vrot.slane %v467, %v1086
    %v1088 = vlaneseq
    %v1089 = vshrl.u32 %v1088, 7
    %v1090 = vsub.s32 0, %v1089
    %v1091 = vrot.slane %v471, %v1090
    %v1092 = vlaneseq
    %v1093 = vshrl.u32 %v1092, 7
    %v1094 = vsub.s32 0, %v1093
    %v1095 = vrot.slane %v475, %v1094
    %v1096 = vlaneseq
    %v1097 = vshrl.u32 %v1096, 7
    %v1098 = vsub.s32 0, %v1097
    %v1099 = vrot.slane %v479, %v1098
    %v1100 = vlaneseq
    %v1101 = vshrl.u32 %v1100, 7
    %v1102 = vsub.s32 0, %v1101
    %v1103 = vrot.slane %v483, %v1102
    %v1104 = vlaneseq
    %v1105 = vshrl.u32 %v1104, 7
    %v1106 = vsub.s32 0, %v1105
    %v1107 = vrot.slane %v487, %v1106
    %v1108 = vlaneseq
    %v1109 = vshrl.u32 %v1108, 7
    %v1110 = vsub.s32 0, %v1109
    %v1111 = vrot.slane %v491, %v1110
    %v1112 = vlaneseq
    %v1113 = vshrl.u32 %v1112, 7
    %v1114 = vsub.s32 0, %v1113
    %v1115 = vrot.slane %v495, %v1114
    %v1116 = vlaneseq
    %v1117 = vshrl.u32 %v1116, 7
    %v1118 = vsub.s32 0, %v1117
    %v1119 = vrot.slane %v499, %v1118
    %v1120 = vlaneseq
    %v1121 = vshrl.u32 %v1120, 7
    %v1122 = vsub.s32 0, %v1121
    %v1123 = vrot.slane %v503, %v1122
    %v1124 = vlaneseq
    %v1125 = vshrl.u32 %v1124, 7
    %v1126 = vsub.s32 0, %v1125
    %v1127 = vrot.slane %v507, %v1126
    %v1128 = vlaneseq
    %v1129 = vshrl.u32 %v1128, 7
    %v1130 = vsub.s32 0, %v1129
    %v1131 = vrot.slane %v511, %v1130
    %v1132 = vlaneseq
    %v1133 = vshrl.u32 %v1132, 7
    %v1134 = vsub.s32 0, %v1133
    %v1135 = vrot.slane %v515, %v1134
    %v1136 = vlaneseq
    %v1137 = vshrl.u32 %v1136, 7
    %v1138 = vsub.s32 0, %v1137
    %v1139 = vrot.slane %v519, %v1138
    %v1140 = vlaneseq
    %v1141 = vshrl.u32 %v1140, 7
    %v1142 = vsub.s32 0, %v1141
    %v1143 = vrot.slane %v523, %v1142
    %v1144 = vlaneseq
    %v1145 = vshrl.u32 %v1144, 7
    %v1146 = vsub.s32 0, %v1145
    %v1147 = vrot.slane %v527, %v1146
    %v1148 = vlaneseq
    %v1149 = vshrl.u32 %v1148, 7
    %v1150 = vsub.s32 0, %v1149
    %v1151 = vrot.slane %v531, %v1150
    %v1152 = vlaneseq
    %v1153 = vshrl.u32 %v1152, 7
    %v1154 = vsub.s32 0, %v1153
    %v1155 = vrot.slane %v535, %v1154
    %v1156 = vlaneseq
    %v1157 = vshrl.u32 %v1156, 7
    %v1158 = vsub.s32 0, %v1157
    %v1159 = vrot.slane %v539, %v1158
    %v1160 = vlaneseq
    %v1161 = vshrl.u32 %v1160, 7
    %v1162 = vsub.s32 0, %v1161
    %v1163 = vrot.slane %v543, %v1162
    %v1164 = vlaneseq
    %v1165 = vshrl.u32 %v1164, 7
    %v1166 = vsub.s32 0, %v1165
    %v1167 = vrot.slane %v547, %v1166
    %v1168 = vlaneseq
    %v1169 = vshrl.u32 %v1168, 7
    %v1170 = vsub.s32 0, %v1169
    %v1171 = vrot.slane %v551, %v1170
    %v1172 = vlaneseq
    %v1173 = vshrl.u32 %v1172, 7
    %v1174 = vsub.s32 0, %v1173
    %v1175 = vrot.slane %v555, %v1174
    %v1176 = vlaneseq
    %v1177 = vshrl.u32 %v1176, 7
    %v1178 = vsub.s32 0, %v1177
    %v1179 = vrot.slane %v559, %v1178
    %v1180 = vlaneseq
    %v1181 = vshrl.u32 %v1180, 7
    %v1182 = vsub.s32 0, %v1181
    %v1183 = vrot.slane %v563, %v1182
    %v1184 = vlaneseq
    %v1185 = vshrl.u32 %v1184, 7
    %v1186 = vsub.s32 0, %v1185
    %v1187 = vrot.slane %v567, %v1186
    %v1188 = vlaneseq
    %v1189 = vshrl.u32 %v1188, 7
    %v1190 = vsub.s32 0, %v1189
    %v1191 = vrot.slane %v571, %v1190
    %v1192 = vlaneseq
    %v1193 = vshrl.u32 %v1192, 7
    %v1194 = vsub.s32 0, %v1193
    %v1195 = vrot.slane %v575, %v1194
    %v1196 = vlaneseq
    %v1197 = vshrl.u32 %v1196, 7
    %v1198 = vsub.s32 0, %v1197
    %v1199 = vrot.slane %v579, %v1198
    %v1200 = vlaneseq
    %v1201 = vshrl.u32 %v1200, 7
    %v1202 = vsub.s32 0, %v1201
    %v1203 = vrot.slane %v583, %v1202
    %v1204 = vlaneseq
    %v1205 = vshrl.u32 %v1204, 7
    %v1206 = vsub.s32 0, %v1205
    %v1207 = vrot.slane %v587, %v1206
    %v1208 = vlaneseq
    %v1209 = vshrl.u32 %v1208, 7
    %v1210 = vsub.s32 0, %v1209
    %v1211 = vrot.slane %v591, %v1210
    %v1212 = vlaneseq
    %v1213 = vshrl.u32 %v1212, 7
    %v1214 = vsub.s32 0, %v1213
    %v1215 = vrot.slane %v595, %v1214
    %v1216 = vlaneseq
    %v1217 = vshrl.u32 %v1216, 7
    %v1218 = vsub.s32 0, %v1217
    %v1219 = vrot.slane %v599, %v1218
    %v1220 = vlaneseq
    %v1221 = vshrl.u32 %v1220, 7
    %v1222 = vsub.s32 0, %v1221
    %v1223 = vrot.slane %v603, %v1222
    %v1224 = vlaneseq
    %v1225 = vshrl.u32 %v1224, 7
    %v1226 = vsub.s32 0, %v1225
    %v1227 = vrot.slane %v607, %v1226
    %v1228 = vlaneseq
    %v1229 = vshrl.u32 %v1228, 7
    %v1230 = vsub.s32 0, %v1229
    %v1231 = vrot.slane %v611, %v1230
    %v1232 = vlaneseq
    %v1233 = vshrl.u32 %v1232, 7
    %v1234 = vsub.s32 0, %v1233
    %v1235 = vrot.slane %v615, %v1234
    %v1236 = vlaneseq
    %v1237 = vshrl.u32 %v1236, 7
    %v1238 = vsub.s32 0, %v1237
    %v1239 = vrot.slane %v619, %v1238
    %v1240 = vlaneseq
    %v1241 = vshrl.u32 %v1240, 7
    %v1242 = vsub.s32 0, %v1241
    %v1243 = vrot.slane %v623, %v1242
    %v1244 = vlaneseq
    %v1245 = vshrl.u32 %v1244, 7
    %v1246 = vsub.s32 0, %v1245
    %v1247 = vrot.slane %v627, %v1246
    %v1248 = vlaneseq
    %v1249 = vshrl.u32 %v1248, 7
    %v1250 = vsub.s32 0, %v1249
    %v1251 = vrot.slane %v631, %v1250
    %v1252 = vlaneseq
    %v1253 = vshrl.u32 %v1252, 7
    %v1254 = vsub.s32 0, %v1253
    %v1255 = vrot.slane %v635, %v1254
    %v1256 = vlaneseq
    %v1257 = vshrl.u32 %v1256, 7
    %v1258 = vsub.s32 0, %v1257
    %v1259 = vrot.slane %v639, %v1258
    %v1260 = vlaneseq
    %v1261 = vshrl.u32 %v1260, 7
    %v1262 = vsub.s32 0, %v1261
    %v1263 = vrot.slane %v643, %v1262
    %v1264 = vlaneseq
    %v1265 = vshrl.u32 %v1264, 7
    %v1266 = vsub.s32 0, %v1265
    %v1267 = vrot.slane %v647, %v1266
    %v1268 = vlaneseq
    %v1269 = vshrl.u32 %v1268, 7
    %v1270 = vsub.s32 0, %v1269
    %v1271 = vrot.slane %v651, %v1270
    %v1272 = vlaneseq
    %v1273 = vshrl.u32 %v1272, 7
    %v1274 = vsub.s32 0, %v1273
    %v1275 = vrot.slane %v655, %v1274
    %v1276 = vlaneseq
    %v1277 = vshrl.u32 %v1276, 7
    %v1278 = vsub.s32 0, %v1277
    %v1279 = vrot.slane %v659, %v1278
    %v1280 = vlaneseq
    %v1281 = vshrl.u32 %v1280, 7
    %v1282 = vsub.s32 0, %v1281
    %v1283 = vrot.slane %v663, %v1282
    %v1284 = vlaneseq
    %v1285 = vshrl.u32 %v1284, 7
    %v1286 = vsub.s32 0, %v1285
    %v1287 = vrot.slane %v667, %v1286
    %v1288 = vlaneseq
    %v1289 = vshrl.u32 %v1288, 7
    %v1290 = vsub.s32 0, %v1289
    %v1291 = vrot.slane %v671, %v1290
    %v1292 = vlaneseq
    %v1293 = vshrl.u32 %v1292, 7
    %v1294 = vsub.s32 0, %v1293
    %v1295 = vrot.slane %v675, %v1294
    %v1296 = vlaneseq
    %v1297 = vshrl.u32 %v1296, 7
    %v1298 = vsub.s32 0, %v1297
    %v1299 = vrot.slane %v679, %v1298
    %v1300 = vlaneseq
    %v1301 = vshrl.u32 %v1300, 7
    %v1302 = vsub.s32 0, %v1301
    %v1303 = vrot.slane %v683, %v1302
    %v1304 = vlaneseq
    %v1305 = vshrl.u32 %v1304, 7
    %v1306 = vsub.s32 0, %v1305
    %v1307 = vrot.slane %v687, %v1306
    %v1308 = vlaneseq
    %v1309 = vshrl.u32 %v1308, 7
    %v1310 = vsub.s32 0, %v1309
    %v1311 = vrot.slane %v691, %v1310
    %v1312 = vlaneseq
    %v1313 = vshrl.u32 %v1312, 7
    %v1314 = vsub.s32 0, %v1313
    %v1315 = vrot.slane %v695, %v1314
    %v1316 = vlaneseq
    %v1317 = vshrl.u32 %v1316, 7
    %v1318 = vsub.s32 0, %v1317
    %v1319 = vrot.slane %v699, %v1318
    %v1320 = vlaneseq
    %v1321 = vshrl.u32 %v1320, 7
    %v1322 = vsub.s32 0, %v1321
    %v1323 = vrot.slane %v703, %v1322
    %v1324 = vlaneseq
    %v1325 = vshrl.u32 %v1324, 7
    %v1326 = vsub.s32 0, %v1325
    %v1327 = vrot.slane %v707, %v1326
    %v1328 = vlaneseq
    %v1329 = vshrl.u32 %v1328, 7
    %v1330 = vsub.s32 0, %v1329
    %v1331 = vrot.slane %v711, %v1330
    %v1332 = vlaneseq
    %v1333 = vshrl.u32 %v1332, 7
    %v1334 = vsub.s32 0, %v1333
    %v1335 = vrot.slane %v715, %v1334
    %v1336 = vlaneseq
    %v1337 = vshrl.u32 %v1336, 7
    %v1338 = vsub.s32 0, %v1337
    %v1339 = vrot.slane %v719, %v1338
    %v1340 = vmul.f32 %v38, %v847
    %v1341 = vmul.f32 %v39, %v851
    %v1342 = vmul.f32 %v40, %v855
    %v1343 = vmul.f32 %v41, %v859
    %v1344 = vmul.f32 %v42, %v863
    %v1345 = vmul.f32 %v43, %v867
    %v1346 = vmul.f32 %v44, %v871
    %v1347 = vmul.f32 %v45, %v875
    %v1348 = vmul.f32 %v46, %v879
    %v1349 = vmul.f32 %v47, %v883
    %v1350 = vmul.f32 %v48, %v887
    %v1351 = vmul.f32 %v49, %v891
    %v1352 = vmul.f32 %v50, %v895
    %v1353 = vmul.f32 %v51, %v899
    %v1354 = vmul.f32 %v52, %v903
    %v1355 = vmul.f32 %v53, %v907
    %v1356 = vmul.f32 %v54, %v911
    %v1357 = vmul.f32 %v55, %v915
    %v1358 = vmul.f32 %v56, %v919
    %v1359 = vmul.f32 %v57, %v923
    %v1360 = vmul.f32 %v58, %v927
    %v1361 = vmul.f32 %v59, %v931
    %v1362 = vmul.f32 %v60, %v935
    %v1363 = vmul.f32 %v61, %v939
    %v1364 = vmul.f32 %v62, %v943
    %v1365 = vmul.f32 %v63, %v947
    %v1366 = vmul.f32 %v64, %v951
    %v1367 = vmul.f32 %v65, %v955
    %v1368 = vmul.f32 %v66, %v959
    %v1369 = vmul.f32 %v67, %v963
    %v1370 = vmul.f32 %v68, %v967
    %v1371 = vmul.f32 %v69, %v971
    %v1372 = vmul.f32 %v70, %v975
    %v1373 = vmul.f32 %v71, %v979
    %v1374 = vmul.f32 %v72, %v983
    %v1375 = vmul.f32 %v73, %v987
    %v1376 = vmul.f32 %v74, %v991
    %v1377 = vmul.f32 %v75, %v995
    %v1378 = vmul.f32 %v76, %v999
    %v1379 = vmul.f32 %v77, %v1003
    %v1380 = vmul.f32 %v78, %v1007
    %v1381 = vmul.f32 %v79, %v1011
    %v1382 = vmul.f32 %v80, %v1015
    %v1383 = vmul.f32 %v81, %v1019
    %v1384 = vmul.f32 %v82, %v1023
    %v1385 = vmul.f32 %v83, %v1027
    %v1386 = vmul.f32 %v84, %v1031
    %v1387 = vmul.f32 %v85, %v1035
    %v1388 = vmul.f32 %v86, %v1039
    %v1389 = vmul.f32 %v87, %v1043
    %v1390 = vmul.f32 %v88, %v1047
    %v1391 = vmul.f32 %v89, %v1051
    %v1392 = vmul.f32 %v90, %v1055
    %v1393 = vmul.f32 %v91, %v1059
    %v1394 = vmul.f32 %v92, %v1063
    %v1395 = vmul.f32 %v93, %v1067
    %v1396 = vmul.f32 %v94, %v1071
    %v1397 = vmul.f32 %v95, %v1075
    %v1398 = vmul.f32 %v96, %v1079
    %v1399 = vmul.f32 %v97, %v1083
    %v1400 = vmul.f32 %v98, %v1087
    %v1401 = vmul.f32 %v99, %v1091
    %v1402 = vmul.f32 %v100, %v1095
    %v1403 = vmul.f32 %v101, %v1099
    %v1404 = vmul.f32 %v102, %v1103
    %v1405 = vmul.f32 %v103, %v1107
    %v1406 = vmul.f32 %v104, %v1111
    %v1407 = vmul.f32 %v105, %v1115
    %v1408 = vmul.f32 %v106, %v1119
    %v1409 = vmul.f32 %v107, %v1123
    %v1410 = vmul.f32 %v108, %v1127
    %v1411 = vmul.f32 %v109, %v1131
    %v1412 = vmul.f32 %v110, %v1135
    %v1413 = vmul.f32 %v111, %v1139
    %v1414 = vmul.f32 %v112, %v1143
    %v1415 = vmul.f32 %v113, %v1147
    %v1416 = vmul.f32 %v114, %v1151
    %v1417 = vmul.f32 %v115, %v1155
    %v1418 = vmul.f32 %v116, %v1159
    %v1419 = vmul.f32 %v117, %v1163
    %v1420 = vmul.f32 %v118, %v1167
    %v1421 = vmul.f32 %v119, %v1171
    %v1422 = vmul.f32 %v120, %v1175
    %v1423 = vmul.f32 %v121, %v1179
    %v1424 = vmul.f32 %v122, %v1183
    %v1425 = vmul.f32 %v123, %v1187
    %v1426 = vmul.f32 %v124, %v1191
    %v1427 = vmul.f32 %v125, %v1195
    %v1428 = vmul.f32 %v126, %v1199
    %v1429 = vmul.f32 %v127, %v1203
    %v1430 = vmul.f32 %v128, %v1207
    %v1431 = vmul.f32 %v129, %v1211
    %v1432 = vmul.f32 %v130, %v1215
    %v1433 = vmul.f32 %v131, %v1219
    %v1434 = vmul.f32 %v132, %v1223
    %v1435 = vmul.f32 %v133, %v1227
    %v1436 = vmul.f32 %v134, %v1231
    %v1437 = vmul.f32 %v135, %v1235
    %v1438 = vmul.f32 %v136, %v1239
    %v1439 = vmul.f32 %v137, %v1243
    %v1440 = vmul.f32 %v138, %v1247
    %v1441 = vmul.f32 %v139, %v1251
    %v1442 = vmul.f32 %v140, %v1255
    %v1443 = vmul.f32 %v141, %v1259
    %v1444 = vmul.f32 %v142, %v1263
    %v1445 = vmul.f32 %v143, %v1267
    %v1446 = vmul.f32 %v144, %v1271
    %v1447 = vmul.f32 %v145, %v1275
    %v1448 = vmul.f32 %v146, %v1279
    %v1449 = vmul.f32 %v147, %v1283
    %v1450 = vmul.f32 %v148, %v1287
    %v1451 = vmul.f32 %v149, %v1291
    %v1452 = vmul.f32 %v150, %v1295
    %v1453 = vmul.f32 %v151, %v1299
    %v1454 = vmul.f32 %v152, %v1303
    %v1455 = vmul.f32 %v153, %v1307
    %v1456 = vmul.f32 %v154, %v1311
    %v1457 = vmul.f32 %v155, %v1315
    %v1458 = vmul.f32 %v156, %v1319
    %v1459 = vmul.f32 %v157, %v1323
    %v1460 = vmul.f32 %v158, %v1327
    %v1461 = vmul.f32 %v159, %v1331
    %v1462 = vmul.f32 %v160, %v1335
    %v1463 = vmul.f32 %v161, %v1339
    %v1464 = vadd.f32 %v1340, %v1341
    %v1465 = vadd.f32 %v1464, %v1342
    %v1466 = vadd.f32 %v1465, %v1343
    %v1467 = vadd.f32 %v1466, %v1344
    %v1468 = vadd.f32 %v1467, %v1345
    %v1469 = vadd.f32 %v1468, %v1346
    %v1470 = vadd.f32 %v1469, %v1347
    %v1471 = vadd.f32 %v1470, %v1348
    %v1472 = vadd.f32 %v1471, %v1349
    %v1473 = vadd.f32 %v1472, %v1350
    %v1474 = vadd.f32 %v1473, %v1351
    %v1475 = vadd.f32 %v1474, %v1352
    %v1476 = vadd.f32 %v1475, %v1353
    %v1477 = vadd.f32 %v1476, %v1354
    %v1478 = vadd.f32 %v1477, %v1355
    %v1479 = vadd.f32 %v1478, %v1356
    %v1480 = vadd.f32 %v1479, %v1357
    %v1481 = vadd.f32 %v1480, %v1358
    %v1482 = vadd.f32 %v1481, %v1359
    %v1483 = vadd.f32 %v1482, %v1360
    %v1484 = vadd.f32 %v1483, %v1361
    %v1485 = vadd.f32 %v1484, %v1362
    %v1486 = vadd.f32 %v1485, %v1363
    %v1487 = vadd.f32 %v1486, %v1364
    %v1488 = vadd.f32 %v1487, %v1365
    %v1489 = vadd.f32 %v1488, %v1366
    %v1490 = vadd.f32 %v1489, %v1367
    %v1491 = vadd.f32 %v1490, %v1368
    %v1492 = vadd.f32 %v1491, %v1369
    %v1493 = vadd.f32 %v1492, %v1370
    %v1494 = vadd.f32 %v1493, %v1371
    %v1495 = vadd.f32 %v1494, %v1372
    %v1496 = vadd.f32 %v1495, %v1373
    %v1497 = vadd.f32 %v1496, %v1374
    %v1498 = vadd.f32 %v1497, %v1375
    %v1499 = vadd.f32 %v1498, %v1376
    %v1500 = vadd.f32 %v1499, %v1377
    %v1501 = vadd.f32 %v1500, %v1378
    %v1502 = vadd.f32 %v1501, %v1379
    %v1503 = vadd.f32 %v1502, %v1380
    %v1504 = vadd.f32 %v1503, %v1381
    %v1505 = vadd.f32 %v1504, %v1382
    %v1506 = vadd.f32 %v1505, %v1383
    %v1507 = vadd.f32 %v1506, %v1384
    %v1508 = vadd.f32 %v1507, %v1385
    %v1509 = vadd.f32 %v1508, %v1386
    %v1510 = vadd.f32 %v1509, %v1387
    %v1511 = vadd.f32 %v1510, %v1388
    %v1512 = vadd.f32 %v1511, %v1389
    %v1513 = vadd.f32 %v1512, %v1390
    %v1514 = vadd.f32 %v1513, %v1391
    %v1515 = vadd.f32 %v1514, %v1392
    %v1516 = vadd.f32 %v1515, %v1393
    %v1517 = vadd.f32 %v1516, %v1394
    %v1518 = vadd.f32 %v1517, %v1395
    %v1519 = vadd.f32 %v1518, %v1396
    %v1520 = vadd.f32 %v1519, %v1397
    %v1521 = vadd.f32 %v1520, %v1398
    %v1522 = vadd.f32 %v1521, %v1399
    %v1523 = vadd.f32 %v1522, %v1400
    %v1524 = vadd.f32 %v1523, %v1401
    %v1525 = vadd.f32 %v1524, %v1402
    %v1526 = vadd.f32 %v1525, %v1403
    %v1527 = vadd.f32 %v1526, %v1404
    %v1528 = vadd.f32 %v1527, %v1405
    %v1529 = vadd.f32 %v1528, %v1406
    %v1530 = vadd.f32 %v1529, %v1407
    %v1531 = vadd.f32 %v1530, %v1408
    %v1532 = vadd.f32 %v1531, %v1409
    %v1533 = vadd.f32 %v1532, %v1410
    %v1534 = vadd.f32 %v1533, %v1411
    %v1535 = vadd.f32 %v1534, %v1412
    %v1536 = vadd.f32 %v1535, %v1413
    %v1537 = vadd.f32 %v1536, %v1414
    %v1538 = vadd.f32 %v1537, %v1415
    %v1539 = vadd.f32 %v1538, %v1416
    %v1540 = vadd.f32 %v1539, %v1417
    %v1541 = vadd.f32 %v1540, %v1418
    %v1542 = vadd.f32 %v1541, %v1419
    %v1543 = vadd.f32 %v1542, %v1420
    %v1544 = vadd.f32 %v1543, %v1421
    %v1545 = vadd.f32 %v1544, %v1422
    %v1546 = vadd.f32 %v1545, %v1423
    %v1547 = vadd.f32 %v1546, %v1424
    %v1548 = vadd.f32 %v1547, %v1425
    %v1549 = vadd.f32 %v1548, %v1426
    %v1550 = vadd.f32 %v1549, %v1427
    %v1551 = vadd.f32 %v1550, %v1428
    %v1552 = vadd.f32 %v1551, %v1429
    %v1553 = vadd.f32 %v1552, %v1430
    %v1554 = vadd.f32 %v1553, %v1431
    %v1555 = vadd.f32 %v1554, %v1432
    %v1556 = vadd.f32 %v1555, %v1433
    %v1557 = vadd.f32 %v1556, %v1434
    %v1558 = vadd.f32 %v1557, %v1435
    %v1559 = vadd.f32 %v1558, %v1436
    %v1560 = vadd.f32 %v1559, %v1437
    %v1561 = vadd.f32 %v1560, %v1438
    %v1562 = vadd.f32 %v1561, %v1439
    %v1563 = vadd.f32 %v1562, %v1440
    %v1564 = vadd.f32 %v1563, %v1441
    %v1565 = vadd.f32 %v1564, %v1442
    %v1566 = vadd.f32 %v1565, %v1443
    %v1567 = vadd.f32 %v1566, %v1444
    %v1568 = vadd.f32 %v1567, %v1445
    %v1569 = vadd.f32 %v1568, %v1446
    %v1570 = vadd.f32 %v1569, %v1447
    %v1571 = vadd.f32 %v1570, %v1448
    %v1572 = vadd.f32 %v1571, %v1449
    %v1573 = vadd.f32 %v1572, %v1450
    %v1574 = vadd.f32 %v1573, %v1451
    %v1575 = vadd.f32 %v1574, %v1452
    %v1576 = vadd.f32 %v1575, %v1453
    %v1577 = vadd.f32 %v1576, %v1454
    %v1578 = vadd.f32 %v1577, %v1455
    %v1579 = vadd.f32 %v1578, %v1456
    %v1580 = vadd.f32 %v1579, %v1457
    %v1581 = vadd.f32 %v1580, %v1458
    %v1582 = vadd.f32 %v1581, %v1459
    %v1583 = vadd.f32 %v1582, %v1460
    %v1584 = vadd.f32 %v1583, %v1461
    %v1585 = vadd.f32 %v1584, %v1462
    %vm1586 = vcmask 523264
    %v1587 = vsel %vm1586, %v1463, 0.0
    %v1588 = vadd.f32 %v1585, %v1587
    %1589 = vadd.xlane.f32.xlu0 %v1588
    %v1590 = vpop.xlane.xlu0 %1589
    %v1591 = vlaneseq
    %v1592 = vshrl.u32 %v1591, 7
    %v1593 = vsub.s32 1, %v1592
    %v1594 = vrot.slane %v162, %v1593
    %v1595 = vlaneseq
    %v1596 = vshrl.u32 %v1595, 7
    %v1597 = vsub.s32 3, %v1596
    %v1598 = vrot.slane %v162, %v1597
    %v1599 = vlaneseq
    %v1600 = vshrl.u32 %v1599, 7
    %v1601 = vsub.s32 5, %v1600
    %v1602 = vrot.slane %v162, %v1601
    %v1603 = vlaneseq
    %v1604 = vshrl.u32 %v1603, 7
    %v1605 = vsub.s32 7, %v1604
    %v1606 = vrot.slane %v162, %v1605
    %v1607 = vlaneseq
    %v1608 = vshrl.u32 %v1607, 7
    %v1609 = vsub.s32 1, %v1608
    %v1610 = vrot.slane %v163, %v1609
    %v1611 = vlaneseq
    %v1612 = vshrl.u32 %v1611, 7
    %v1613 = vsub.s32 3, %v1612
    %v1614 = vrot.slane %v163, %v1613
    %v1615 = vlaneseq
    %v1616 = vshrl.u32 %v1615, 7
    %v1617 = vsub.s32 5, %v1616
    %v1618 = vrot.slane %v163, %v1617
    %v1619 = vlaneseq
    %v1620 = vshrl.u32 %v1619, 7
    %v1621 = vsub.s32 7, %v1620
    %v1622 = vrot.slane %v163, %v1621
    %v1623 = vlaneseq
    %v1624 = vshrl.u32 %v1623, 7
    %v1625 = vsub.s32 1, %v1624
    %v1626 = vrot.slane %v164, %v1625
    %v1627 = vlaneseq
    %v1628 = vshrl.u32 %v1627, 7
    %v1629 = vsub.s32 3, %v1628
    %v1630 = vrot.slane %v164, %v1629
    %v1631 = vlaneseq
    %v1632 = vshrl.u32 %v1631, 7
    %v1633 = vsub.s32 5, %v1632
    %v1634 = vrot.slane %v164, %v1633
    %v1635 = vlaneseq
    %v1636 = vshrl.u32 %v1635, 7
    %v1637 = vsub.s32 7, %v1636
    %v1638 = vrot.slane %v164, %v1637
    %v1639 = vlaneseq
    %v1640 = vshrl.u32 %v1639, 7
    %v1641 = vsub.s32 1, %v1640
    %v1642 = vrot.slane %v165, %v1641
    %v1643 = vlaneseq
    %v1644 = vshrl.u32 %v1643, 7
    %v1645 = vsub.s32 3, %v1644
    %v1646 = vrot.slane %v165, %v1645
    %v1647 = vlaneseq
    %v1648 = vshrl.u32 %v1647, 7
    %v1649 = vsub.s32 5, %v1648
    %v1650 = vrot.slane %v165, %v1649
    %v1651 = vlaneseq
    %v1652 = vshrl.u32 %v1651, 7
    %v1653 = vsub.s32 7, %v1652
    %v1654 = vrot.slane %v165, %v1653
    %v1655 = vlaneseq
    %v1656 = vshrl.u32 %v1655, 7
    %v1657 = vsub.s32 1, %v1656
    %v1658 = vrot.slane %v166, %v1657
    %v1659 = vlaneseq
    %v1660 = vshrl.u32 %v1659, 7
    %v1661 = vsub.s32 3, %v1660
    %v1662 = vrot.slane %v166, %v1661
    %v1663 = vlaneseq
    %v1664 = vshrl.u32 %v1663, 7
    %v1665 = vsub.s32 5, %v1664
    %v1666 = vrot.slane %v166, %v1665
    %v1667 = vlaneseq
    %v1668 = vshrl.u32 %v1667, 7
    %v1669 = vsub.s32 7, %v1668
    %v1670 = vrot.slane %v166, %v1669
    %v1671 = vlaneseq
    %v1672 = vshrl.u32 %v1671, 7
    %v1673 = vsub.s32 1, %v1672
    %v1674 = vrot.slane %v167, %v1673
    %v1675 = vlaneseq
    %v1676 = vshrl.u32 %v1675, 7
    %v1677 = vsub.s32 3, %v1676
    %v1678 = vrot.slane %v167, %v1677
    %v1679 = vlaneseq
    %v1680 = vshrl.u32 %v1679, 7
    %v1681 = vsub.s32 5, %v1680
    %v1682 = vrot.slane %v167, %v1681
    %v1683 = vlaneseq
    %v1684 = vshrl.u32 %v1683, 7
    %v1685 = vsub.s32 7, %v1684
    %v1686 = vrot.slane %v167, %v1685
    %v1687 = vlaneseq
    %v1688 = vshrl.u32 %v1687, 7
    %v1689 = vsub.s32 1, %v1688
    %v1690 = vrot.slane %v168, %v1689
    %v1691 = vlaneseq
    %v1692 = vshrl.u32 %v1691, 7
    %v1693 = vsub.s32 3, %v1692
    %v1694 = vrot.slane %v168, %v1693
    %v1695 = vlaneseq
    %v1696 = vshrl.u32 %v1695, 7
    %v1697 = vsub.s32 5, %v1696
    %v1698 = vrot.slane %v168, %v1697
    %v1699 = vlaneseq
    %v1700 = vshrl.u32 %v1699, 7
    %v1701 = vsub.s32 7, %v1700
    %v1702 = vrot.slane %v168, %v1701
    %v1703 = vlaneseq
    %v1704 = vshrl.u32 %v1703, 7
    %v1705 = vsub.s32 1, %v1704
    %v1706 = vrot.slane %v169, %v1705
    %v1707 = vlaneseq
    %v1708 = vshrl.u32 %v1707, 7
    %v1709 = vsub.s32 3, %v1708
    %v1710 = vrot.slane %v169, %v1709
    %v1711 = vlaneseq
    %v1712 = vshrl.u32 %v1711, 7
    %v1713 = vsub.s32 5, %v1712
    %v1714 = vrot.slane %v169, %v1713
    %v1715 = vlaneseq
    %v1716 = vshrl.u32 %v1715, 7
    %v1717 = vsub.s32 7, %v1716
    %v1718 = vrot.slane %v169, %v1717
    %v1719 = vlaneseq
    %v1720 = vshrl.u32 %v1719, 7
    %v1721 = vsub.s32 1, %v1720
    %v1722 = vrot.slane %v170, %v1721
    %v1723 = vlaneseq
    %v1724 = vshrl.u32 %v1723, 7
    %v1725 = vsub.s32 3, %v1724
    %v1726 = vrot.slane %v170, %v1725
    %v1727 = vlaneseq
    %v1728 = vshrl.u32 %v1727, 7
    %v1729 = vsub.s32 5, %v1728
    %v1730 = vrot.slane %v170, %v1729
    %v1731 = vlaneseq
    %v1732 = vshrl.u32 %v1731, 7
    %v1733 = vsub.s32 7, %v1732
    %v1734 = vrot.slane %v170, %v1733
    %v1735 = vlaneseq
    %v1736 = vshrl.u32 %v1735, 7
    %v1737 = vsub.s32 1, %v1736
    %v1738 = vrot.slane %v171, %v1737
    %v1739 = vlaneseq
    %v1740 = vshrl.u32 %v1739, 7
    %v1741 = vsub.s32 3, %v1740
    %v1742 = vrot.slane %v171, %v1741
    %v1743 = vlaneseq
    %v1744 = vshrl.u32 %v1743, 7
    %v1745 = vsub.s32 5, %v1744
    %v1746 = vrot.slane %v171, %v1745
    %v1747 = vlaneseq
    %v1748 = vshrl.u32 %v1747, 7
    %v1749 = vsub.s32 7, %v1748
    %v1750 = vrot.slane %v171, %v1749
    %v1751 = vlaneseq
    %v1752 = vshrl.u32 %v1751, 7
    %v1753 = vsub.s32 1, %v1752
    %v1754 = vrot.slane %v172, %v1753
    %v1755 = vlaneseq
    %v1756 = vshrl.u32 %v1755, 7
    %v1757 = vsub.s32 3, %v1756
    %v1758 = vrot.slane %v172, %v1757
    %v1759 = vlaneseq
    %v1760 = vshrl.u32 %v1759, 7
    %v1761 = vsub.s32 5, %v1760
    %v1762 = vrot.slane %v172, %v1761
    %v1763 = vlaneseq
    %v1764 = vshrl.u32 %v1763, 7
    %v1765 = vsub.s32 7, %v1764
    %v1766 = vrot.slane %v172, %v1765
    %v1767 = vlaneseq
    %v1768 = vshrl.u32 %v1767, 7
    %v1769 = vsub.s32 1, %v1768
    %v1770 = vrot.slane %v173, %v1769
    %v1771 = vlaneseq
    %v1772 = vshrl.u32 %v1771, 7
    %v1773 = vsub.s32 3, %v1772
    %v1774 = vrot.slane %v173, %v1773
    %v1775 = vlaneseq
    %v1776 = vshrl.u32 %v1775, 7
    %v1777 = vsub.s32 5, %v1776
    %v1778 = vrot.slane %v173, %v1777
    %v1779 = vlaneseq
    %v1780 = vshrl.u32 %v1779, 7
    %v1781 = vsub.s32 7, %v1780
    %v1782 = vrot.slane %v173, %v1781
    %v1783 = vlaneseq
    %v1784 = vshrl.u32 %v1783, 7
    %v1785 = vsub.s32 1, %v1784
    %v1786 = vrot.slane %v174, %v1785
    %v1787 = vlaneseq
    %v1788 = vshrl.u32 %v1787, 7
    %v1789 = vsub.s32 3, %v1788
    %v1790 = vrot.slane %v174, %v1789
    %v1791 = vlaneseq
    %v1792 = vshrl.u32 %v1791, 7
    %v1793 = vsub.s32 5, %v1792
    %v1794 = vrot.slane %v174, %v1793
    %v1795 = vlaneseq
    %v1796 = vshrl.u32 %v1795, 7
    %v1797 = vsub.s32 7, %v1796
    %v1798 = vrot.slane %v174, %v1797
    %v1799 = vlaneseq
    %v1800 = vshrl.u32 %v1799, 7
    %v1801 = vsub.s32 1, %v1800
    %v1802 = vrot.slane %v175, %v1801
    %v1803 = vlaneseq
    %v1804 = vshrl.u32 %v1803, 7
    %v1805 = vsub.s32 3, %v1804
    %v1806 = vrot.slane %v175, %v1805
    %v1807 = vlaneseq
    %v1808 = vshrl.u32 %v1807, 7
    %v1809 = vsub.s32 5, %v1808
    %v1810 = vrot.slane %v175, %v1809
    %v1811 = vlaneseq
    %v1812 = vshrl.u32 %v1811, 7
    %v1813 = vsub.s32 7, %v1812
    %v1814 = vrot.slane %v175, %v1813
    %v1815 = vlaneseq
    %v1816 = vshrl.u32 %v1815, 7
    %v1817 = vsub.s32 1, %v1816
    %v1818 = vrot.slane %v176, %v1817
    %v1819 = vlaneseq
    %v1820 = vshrl.u32 %v1819, 7
    %v1821 = vsub.s32 3, %v1820
    %v1822 = vrot.slane %v176, %v1821
    %v1823 = vlaneseq
    %v1824 = vshrl.u32 %v1823, 7
    %v1825 = vsub.s32 5, %v1824
    %v1826 = vrot.slane %v176, %v1825
    %v1827 = vlaneseq
    %v1828 = vshrl.u32 %v1827, 7
    %v1829 = vsub.s32 7, %v1828
    %v1830 = vrot.slane %v176, %v1829
    %v1831 = vlaneseq
    %v1832 = vshrl.u32 %v1831, 7
    %v1833 = vsub.s32 1, %v1832
    %v1834 = vrot.slane %v177, %v1833
    %v1835 = vlaneseq
    %v1836 = vshrl.u32 %v1835, 7
    %v1837 = vsub.s32 3, %v1836
    %v1838 = vrot.slane %v177, %v1837
    %v1839 = vlaneseq
    %v1840 = vshrl.u32 %v1839, 7
    %v1841 = vsub.s32 5, %v1840
    %v1842 = vrot.slane %v177, %v1841
    %v1843 = vlaneseq
    %v1844 = vshrl.u32 %v1843, 7
    %v1845 = vsub.s32 7, %v1844
    %v1846 = vrot.slane %v177, %v1845
    %v1847 = vlaneseq
    %v1848 = vshrl.u32 %v1847, 7
    %v1849 = vsub.s32 1, %v1848
    %v1850 = vrot.slane %v178, %v1849
    %v1851 = vlaneseq
    %v1852 = vshrl.u32 %v1851, 7
    %v1853 = vsub.s32 3, %v1852
    %v1854 = vrot.slane %v178, %v1853
    %v1855 = vlaneseq
    %v1856 = vshrl.u32 %v1855, 7
    %v1857 = vsub.s32 5, %v1856
    %v1858 = vrot.slane %v178, %v1857
    %v1859 = vlaneseq
    %v1860 = vshrl.u32 %v1859, 7
    %v1861 = vsub.s32 7, %v1860
    %v1862 = vrot.slane %v178, %v1861
    %v1863 = vlaneseq
    %v1864 = vshrl.u32 %v1863, 7
    %v1865 = vsub.s32 1, %v1864
    %v1866 = vrot.slane %v179, %v1865
    %v1867 = vlaneseq
    %v1868 = vshrl.u32 %v1867, 7
    %v1869 = vsub.s32 3, %v1868
    %v1870 = vrot.slane %v179, %v1869
    %v1871 = vlaneseq
    %v1872 = vshrl.u32 %v1871, 7
    %v1873 = vsub.s32 5, %v1872
    %v1874 = vrot.slane %v179, %v1873
    %v1875 = vlaneseq
    %v1876 = vshrl.u32 %v1875, 7
    %v1877 = vsub.s32 7, %v1876
    %v1878 = vrot.slane %v179, %v1877
    %v1879 = vlaneseq
    %v1880 = vshrl.u32 %v1879, 7
    %v1881 = vsub.s32 1, %v1880
    %v1882 = vrot.slane %v180, %v1881
    %v1883 = vlaneseq
    %v1884 = vshrl.u32 %v1883, 7
    %v1885 = vsub.s32 3, %v1884
    %v1886 = vrot.slane %v180, %v1885
    %v1887 = vlaneseq
    %v1888 = vshrl.u32 %v1887, 7
    %v1889 = vsub.s32 5, %v1888
    %v1890 = vrot.slane %v180, %v1889
    %v1891 = vlaneseq
    %v1892 = vshrl.u32 %v1891, 7
    %v1893 = vsub.s32 7, %v1892
    %v1894 = vrot.slane %v180, %v1893
    %v1895 = vlaneseq
    %v1896 = vshrl.u32 %v1895, 7
    %v1897 = vsub.s32 1, %v1896
    %v1898 = vrot.slane %v181, %v1897
    %v1899 = vlaneseq
    %v1900 = vshrl.u32 %v1899, 7
    %v1901 = vsub.s32 3, %v1900
    %v1902 = vrot.slane %v181, %v1901
    %v1903 = vlaneseq
    %v1904 = vshrl.u32 %v1903, 7
    %v1905 = vsub.s32 5, %v1904
    %v1906 = vrot.slane %v181, %v1905
    %v1907 = vlaneseq
    %v1908 = vshrl.u32 %v1907, 7
    %v1909 = vsub.s32 7, %v1908
    %v1910 = vrot.slane %v181, %v1909
    %v1911 = vlaneseq
    %v1912 = vshrl.u32 %v1911, 7
    %v1913 = vsub.s32 1, %v1912
    %v1914 = vrot.slane %v182, %v1913
    %v1915 = vlaneseq
    %v1916 = vshrl.u32 %v1915, 7
    %v1917 = vsub.s32 3, %v1916
    %v1918 = vrot.slane %v182, %v1917
    %v1919 = vlaneseq
    %v1920 = vshrl.u32 %v1919, 7
    %v1921 = vsub.s32 5, %v1920
    %v1922 = vrot.slane %v182, %v1921
    %v1923 = vlaneseq
    %v1924 = vshrl.u32 %v1923, 7
    %v1925 = vsub.s32 7, %v1924
    %v1926 = vrot.slane %v182, %v1925
    %v1927 = vlaneseq
    %v1928 = vshrl.u32 %v1927, 7
    %v1929 = vsub.s32 1, %v1928
    %v1930 = vrot.slane %v183, %v1929
    %v1931 = vlaneseq
    %v1932 = vshrl.u32 %v1931, 7
    %v1933 = vsub.s32 3, %v1932
    %v1934 = vrot.slane %v183, %v1933
    %v1935 = vlaneseq
    %v1936 = vshrl.u32 %v1935, 7
    %v1937 = vsub.s32 5, %v1936
    %v1938 = vrot.slane %v183, %v1937
    %v1939 = vlaneseq
    %v1940 = vshrl.u32 %v1939, 7
    %v1941 = vsub.s32 7, %v1940
    %v1942 = vrot.slane %v183, %v1941
    %v1943 = vlaneseq
    %v1944 = vshrl.u32 %v1943, 7
    %v1945 = vsub.s32 1, %v1944
    %v1946 = vrot.slane %v184, %v1945
    %v1947 = vlaneseq
    %v1948 = vshrl.u32 %v1947, 7
    %v1949 = vsub.s32 3, %v1948
    %v1950 = vrot.slane %v184, %v1949
    %v1951 = vlaneseq
    %v1952 = vshrl.u32 %v1951, 7
    %v1953 = vsub.s32 5, %v1952
    %v1954 = vrot.slane %v184, %v1953
    %v1955 = vlaneseq
    %v1956 = vshrl.u32 %v1955, 7
    %v1957 = vsub.s32 7, %v1956
    %v1958 = vrot.slane %v184, %v1957
    %v1959 = vlaneseq
    %v1960 = vshrl.u32 %v1959, 7
    %v1961 = vsub.s32 1, %v1960
    %v1962 = vrot.slane %v185, %v1961
    %v1963 = vlaneseq
    %v1964 = vshrl.u32 %v1963, 7
    %v1965 = vsub.s32 3, %v1964
    %v1966 = vrot.slane %v185, %v1965
    %v1967 = vlaneseq
    %v1968 = vshrl.u32 %v1967, 7
    %v1969 = vsub.s32 5, %v1968
    %v1970 = vrot.slane %v185, %v1969
    %v1971 = vlaneseq
    %v1972 = vshrl.u32 %v1971, 7
    %v1973 = vsub.s32 7, %v1972
    %v1974 = vrot.slane %v185, %v1973
    %v1975 = vlaneseq
    %v1976 = vshrl.u32 %v1975, 7
    %v1977 = vsub.s32 1, %v1976
    %v1978 = vrot.slane %v186, %v1977
    %v1979 = vlaneseq
    %v1980 = vshrl.u32 %v1979, 7
    %v1981 = vsub.s32 3, %v1980
    %v1982 = vrot.slane %v186, %v1981
    %v1983 = vlaneseq
    %v1984 = vshrl.u32 %v1983, 7
    %v1985 = vsub.s32 5, %v1984
    %v1986 = vrot.slane %v186, %v1985
    %v1987 = vlaneseq
    %v1988 = vshrl.u32 %v1987, 7
    %v1989 = vsub.s32 7, %v1988
    %v1990 = vrot.slane %v186, %v1989
    %v1991 = vlaneseq
    %v1992 = vshrl.u32 %v1991, 7
    %v1993 = vsub.s32 1, %v1992
    %v1994 = vrot.slane %v187, %v1993
    %v1995 = vlaneseq
    %v1996 = vshrl.u32 %v1995, 7
    %v1997 = vsub.s32 3, %v1996
    %v1998 = vrot.slane %v187, %v1997
    %v1999 = vlaneseq
    %v2000 = vshrl.u32 %v1999, 7
    %v2001 = vsub.s32 5, %v2000
    %v2002 = vrot.slane %v187, %v2001
    %v2003 = vlaneseq
    %v2004 = vshrl.u32 %v2003, 7
    %v2005 = vsub.s32 7, %v2004
    %v2006 = vrot.slane %v187, %v2005
    %v2007 = vlaneseq
    %v2008 = vshrl.u32 %v2007, 7
    %v2009 = vsub.s32 1, %v2008
    %v2010 = vrot.slane %v188, %v2009
    %v2011 = vlaneseq
    %v2012 = vshrl.u32 %v2011, 7
    %v2013 = vsub.s32 3, %v2012
    %v2014 = vrot.slane %v188, %v2013
    %v2015 = vlaneseq
    %v2016 = vshrl.u32 %v2015, 7
    %v2017 = vsub.s32 5, %v2016
    %v2018 = vrot.slane %v188, %v2017
    %v2019 = vlaneseq
    %v2020 = vshrl.u32 %v2019, 7
    %v2021 = vsub.s32 7, %v2020
    %v2022 = vrot.slane %v188, %v2021
    %v2023 = vlaneseq
    %v2024 = vshrl.u32 %v2023, 7
    %v2025 = vsub.s32 1, %v2024
    %v2026 = vrot.slane %v189, %v2025
    %v2027 = vlaneseq
    %v2028 = vshrl.u32 %v2027, 7
    %v2029 = vsub.s32 3, %v2028
    %v2030 = vrot.slane %v189, %v2029
    %v2031 = vlaneseq
    %v2032 = vshrl.u32 %v2031, 7
    %v2033 = vsub.s32 5, %v2032
    %v2034 = vrot.slane %v189, %v2033
    %v2035 = vlaneseq
    %v2036 = vshrl.u32 %v2035, 7
    %v2037 = vsub.s32 7, %v2036
    %v2038 = vrot.slane %v189, %v2037
    %v2039 = vlaneseq
    %v2040 = vshrl.u32 %v2039, 7
    %v2041 = vsub.s32 1, %v2040
    %v2042 = vrot.slane %v190, %v2041
    %v2043 = vlaneseq
    %v2044 = vshrl.u32 %v2043, 7
    %v2045 = vsub.s32 3, %v2044
    %v2046 = vrot.slane %v190, %v2045
    %v2047 = vlaneseq
    %v2048 = vshrl.u32 %v2047, 7
    %v2049 = vsub.s32 5, %v2048
    %v2050 = vrot.slane %v190, %v2049
    %v2051 = vlaneseq
    %v2052 = vshrl.u32 %v2051, 7
    %v2053 = vsub.s32 7, %v2052
    %v2054 = vrot.slane %v190, %v2053
    %v2055 = vlaneseq
    %v2056 = vshrl.u32 %v2055, 7
    %v2057 = vsub.s32 1, %v2056
    %v2058 = vrot.slane %v191, %v2057
    %v2059 = vlaneseq
    %v2060 = vshrl.u32 %v2059, 7
    %v2061 = vsub.s32 3, %v2060
    %v2062 = vrot.slane %v191, %v2061
    %v2063 = vlaneseq
    %v2064 = vshrl.u32 %v2063, 7
    %v2065 = vsub.s32 5, %v2064
    %v2066 = vrot.slane %v191, %v2065
    %v2067 = vlaneseq
    %v2068 = vshrl.u32 %v2067, 7
    %v2069 = vsub.s32 7, %v2068
    %v2070 = vrot.slane %v191, %v2069
    %v2071 = vlaneseq
    %v2072 = vshrl.u32 %v2071, 7
    %v2073 = vsub.s32 1, %v2072
    %v2074 = vrot.slane %v192, %v2073
    %v2075 = vlaneseq
    %v2076 = vshrl.u32 %v2075, 7
    %v2077 = vsub.s32 3, %v2076
    %v2078 = vrot.slane %v192, %v2077
    %v2079 = vlaneseq
    %v2080 = vshrl.u32 %v2079, 7
    %v2081 = vsub.s32 5, %v2080
    %v2082 = vrot.slane %v192, %v2081
    %v2083 = vlaneseq
    %v2084 = vshrl.u32 %v2083, 7
    %v2085 = vsub.s32 7, %v2084
    %v2086 = vrot.slane %v192, %v2085
    %v2211 = vlaneseq
    %v2212 = vshrl.u32 %v2211, 7
    %v2213 = vsub.s32 1, %v2212
    %v2214 = vrot.slane %v1594, %v2213
    %v2215 = vlaneseq
    %v2216 = vshrl.u32 %v2215, 7
    %v2217 = vsub.s32 1, %v2216
    %v2218 = vrot.slane %v1598, %v2217
    %v2219 = vlaneseq
    %v2220 = vshrl.u32 %v2219, 7
    %v2221 = vsub.s32 1, %v2220
    %v2222 = vrot.slane %v1602, %v2221
    %v2223 = vlaneseq
    %v2224 = vshrl.u32 %v2223, 7
    %v2225 = vsub.s32 1, %v2224
    %v2226 = vrot.slane %v1606, %v2225
    %v2227 = vlaneseq
    %v2228 = vshrl.u32 %v2227, 7
    %v2229 = vsub.s32 1, %v2228
    %v2230 = vrot.slane %v1610, %v2229
    %v2231 = vlaneseq
    %v2232 = vshrl.u32 %v2231, 7
    %v2233 = vsub.s32 1, %v2232
    %v2234 = vrot.slane %v1614, %v2233
    %v2235 = vlaneseq
    %v2236 = vshrl.u32 %v2235, 7
    %v2237 = vsub.s32 1, %v2236
    %v2238 = vrot.slane %v1618, %v2237
    %v2239 = vlaneseq
    %v2240 = vshrl.u32 %v2239, 7
    %v2241 = vsub.s32 1, %v2240
    %v2242 = vrot.slane %v1622, %v2241
    %v2243 = vlaneseq
    %v2244 = vshrl.u32 %v2243, 7
    %v2245 = vsub.s32 1, %v2244
    %v2246 = vrot.slane %v1626, %v2245
    %v2247 = vlaneseq
    %v2248 = vshrl.u32 %v2247, 7
    %v2249 = vsub.s32 1, %v2248
    %v2250 = vrot.slane %v1630, %v2249
    %v2251 = vlaneseq
    %v2252 = vshrl.u32 %v2251, 7
    %v2253 = vsub.s32 1, %v2252
    %v2254 = vrot.slane %v1634, %v2253
    %v2255 = vlaneseq
    %v2256 = vshrl.u32 %v2255, 7
    %v2257 = vsub.s32 1, %v2256
    %v2258 = vrot.slane %v1638, %v2257
    %v2259 = vlaneseq
    %v2260 = vshrl.u32 %v2259, 7
    %v2261 = vsub.s32 1, %v2260
    %v2262 = vrot.slane %v1642, %v2261
    %v2263 = vlaneseq
    %v2264 = vshrl.u32 %v2263, 7
    %v2265 = vsub.s32 1, %v2264
    %v2266 = vrot.slane %v1646, %v2265
    %v2267 = vlaneseq
    %v2268 = vshrl.u32 %v2267, 7
    %v2269 = vsub.s32 1, %v2268
    %v2270 = vrot.slane %v1650, %v2269
    %v2271 = vlaneseq
    %v2272 = vshrl.u32 %v2271, 7
    %v2273 = vsub.s32 1, %v2272
    %v2274 = vrot.slane %v1654, %v2273
    %v2275 = vlaneseq
    %v2276 = vshrl.u32 %v2275, 7
    %v2277 = vsub.s32 1, %v2276
    %v2278 = vrot.slane %v1658, %v2277
    %v2279 = vlaneseq
    %v2280 = vshrl.u32 %v2279, 7
    %v2281 = vsub.s32 1, %v2280
    %v2282 = vrot.slane %v1662, %v2281
    %v2283 = vlaneseq
    %v2284 = vshrl.u32 %v2283, 7
    %v2285 = vsub.s32 1, %v2284
    %v2286 = vrot.slane %v1666, %v2285
    %v2287 = vlaneseq
    %v2288 = vshrl.u32 %v2287, 7
    %v2289 = vsub.s32 1, %v2288
    %v2290 = vrot.slane %v1670, %v2289
    %v2291 = vlaneseq
    %v2292 = vshrl.u32 %v2291, 7
    %v2293 = vsub.s32 1, %v2292
    %v2294 = vrot.slane %v1674, %v2293
    %v2295 = vlaneseq
    %v2296 = vshrl.u32 %v2295, 7
    %v2297 = vsub.s32 1, %v2296
    %v2298 = vrot.slane %v1678, %v2297
    %v2299 = vlaneseq
    %v2300 = vshrl.u32 %v2299, 7
    %v2301 = vsub.s32 1, %v2300
    %v2302 = vrot.slane %v1682, %v2301
    %v2303 = vlaneseq
    %v2304 = vshrl.u32 %v2303, 7
    %v2305 = vsub.s32 1, %v2304
    %v2306 = vrot.slane %v1686, %v2305
    %v2307 = vlaneseq
    %v2308 = vshrl.u32 %v2307, 7
    %v2309 = vsub.s32 1, %v2308
    %v2310 = vrot.slane %v1690, %v2309
    %v2311 = vlaneseq
    %v2312 = vshrl.u32 %v2311, 7
    %v2313 = vsub.s32 1, %v2312
    %v2314 = vrot.slane %v1694, %v2313
    %v2315 = vlaneseq
    %v2316 = vshrl.u32 %v2315, 7
    %v2317 = vsub.s32 1, %v2316
    %v2318 = vrot.slane %v1698, %v2317
    %v2319 = vlaneseq
    %v2320 = vshrl.u32 %v2319, 7
    %v2321 = vsub.s32 1, %v2320
    %v2322 = vrot.slane %v1702, %v2321
    %v2323 = vlaneseq
    %v2324 = vshrl.u32 %v2323, 7
    %v2325 = vsub.s32 1, %v2324
    %v2326 = vrot.slane %v1706, %v2325
    %v2327 = vlaneseq
    %v2328 = vshrl.u32 %v2327, 7
    %v2329 = vsub.s32 1, %v2328
    %v2330 = vrot.slane %v1710, %v2329
    %v2331 = vlaneseq
    %v2332 = vshrl.u32 %v2331, 7
    %v2333 = vsub.s32 1, %v2332
    %v2334 = vrot.slane %v1714, %v2333
    %v2335 = vlaneseq
    %v2336 = vshrl.u32 %v2335, 7
    %v2337 = vsub.s32 1, %v2336
    %v2338 = vrot.slane %v1718, %v2337
    %v2339 = vlaneseq
    %v2340 = vshrl.u32 %v2339, 7
    %v2341 = vsub.s32 1, %v2340
    %v2342 = vrot.slane %v1722, %v2341
    %v2343 = vlaneseq
    %v2344 = vshrl.u32 %v2343, 7
    %v2345 = vsub.s32 1, %v2344
    %v2346 = vrot.slane %v1726, %v2345
    %v2347 = vlaneseq
    %v2348 = vshrl.u32 %v2347, 7
    %v2349 = vsub.s32 1, %v2348
    %v2350 = vrot.slane %v1730, %v2349
    %v2351 = vlaneseq
    %v2352 = vshrl.u32 %v2351, 7
    %v2353 = vsub.s32 1, %v2352
    %v2354 = vrot.slane %v1734, %v2353
    %v2355 = vlaneseq
    %v2356 = vshrl.u32 %v2355, 7
    %v2357 = vsub.s32 1, %v2356
    %v2358 = vrot.slane %v1738, %v2357
    %v2359 = vlaneseq
    %v2360 = vshrl.u32 %v2359, 7
    %v2361 = vsub.s32 1, %v2360
    %v2362 = vrot.slane %v1742, %v2361
    %v2363 = vlaneseq
    %v2364 = vshrl.u32 %v2363, 7
    %v2365 = vsub.s32 1, %v2364
    %v2366 = vrot.slane %v1746, %v2365
    %v2367 = vlaneseq
    %v2368 = vshrl.u32 %v2367, 7
    %v2369 = vsub.s32 1, %v2368
    %v2370 = vrot.slane %v1750, %v2369
    %v2371 = vlaneseq
    %v2372 = vshrl.u32 %v2371, 7
    %v2373 = vsub.s32 1, %v2372
    %v2374 = vrot.slane %v1754, %v2373
    %v2375 = vlaneseq
    %v2376 = vshrl.u32 %v2375, 7
    %v2377 = vsub.s32 1, %v2376
    %v2378 = vrot.slane %v1758, %v2377
    %v2379 = vlaneseq
    %v2380 = vshrl.u32 %v2379, 7
    %v2381 = vsub.s32 1, %v2380
    %v2382 = vrot.slane %v1762, %v2381
    %v2383 = vlaneseq
    %v2384 = vshrl.u32 %v2383, 7
    %v2385 = vsub.s32 1, %v2384
    %v2386 = vrot.slane %v1766, %v2385
    %v2387 = vlaneseq
    %v2388 = vshrl.u32 %v2387, 7
    %v2389 = vsub.s32 1, %v2388
    %v2390 = vrot.slane %v1770, %v2389
    %v2391 = vlaneseq
    %v2392 = vshrl.u32 %v2391, 7
    %v2393 = vsub.s32 1, %v2392
    %v2394 = vrot.slane %v1774, %v2393
    %v2395 = vlaneseq
    %v2396 = vshrl.u32 %v2395, 7
    %v2397 = vsub.s32 1, %v2396
    %v2398 = vrot.slane %v1778, %v2397
    %v2399 = vlaneseq
    %v2400 = vshrl.u32 %v2399, 7
    %v2401 = vsub.s32 1, %v2400
    %v2402 = vrot.slane %v1782, %v2401
    %v2403 = vlaneseq
    %v2404 = vshrl.u32 %v2403, 7
    %v2405 = vsub.s32 1, %v2404
    %v2406 = vrot.slane %v1786, %v2405
    %v2407 = vlaneseq
    %v2408 = vshrl.u32 %v2407, 7
    %v2409 = vsub.s32 1, %v2408
    %v2410 = vrot.slane %v1790, %v2409
    %v2411 = vlaneseq
    %v2412 = vshrl.u32 %v2411, 7
    %v2413 = vsub.s32 1, %v2412
    %v2414 = vrot.slane %v1794, %v2413
    %v2415 = vlaneseq
    %v2416 = vshrl.u32 %v2415, 7
    %v2417 = vsub.s32 1, %v2416
    %v2418 = vrot.slane %v1798, %v2417
    %v2419 = vlaneseq
    %v2420 = vshrl.u32 %v2419, 7
    %v2421 = vsub.s32 1, %v2420
    %v2422 = vrot.slane %v1802, %v2421
    %v2423 = vlaneseq
    %v2424 = vshrl.u32 %v2423, 7
    %v2425 = vsub.s32 1, %v2424
    %v2426 = vrot.slane %v1806, %v2425
    %v2427 = vlaneseq
    %v2428 = vshrl.u32 %v2427, 7
    %v2429 = vsub.s32 1, %v2428
    %v2430 = vrot.slane %v1810, %v2429
    %v2431 = vlaneseq
    %v2432 = vshrl.u32 %v2431, 7
    %v2433 = vsub.s32 1, %v2432
    %v2434 = vrot.slane %v1814, %v2433
    %v2435 = vlaneseq
    %v2436 = vshrl.u32 %v2435, 7
    %v2437 = vsub.s32 1, %v2436
    %v2438 = vrot.slane %v1818, %v2437
    %v2439 = vlaneseq
    %v2440 = vshrl.u32 %v2439, 7
    %v2441 = vsub.s32 1, %v2440
    %v2442 = vrot.slane %v1822, %v2441
    %v2443 = vlaneseq
    %v2444 = vshrl.u32 %v2443, 7
    %v2445 = vsub.s32 1, %v2444
    %v2446 = vrot.slane %v1826, %v2445
    %v2447 = vlaneseq
    %v2448 = vshrl.u32 %v2447, 7
    %v2449 = vsub.s32 1, %v2448
    %v2450 = vrot.slane %v1830, %v2449
    %v2451 = vlaneseq
    %v2452 = vshrl.u32 %v2451, 7
    %v2453 = vsub.s32 1, %v2452
    %v2454 = vrot.slane %v1834, %v2453
    %v2455 = vlaneseq
    %v2456 = vshrl.u32 %v2455, 7
    %v2457 = vsub.s32 1, %v2456
    %v2458 = vrot.slane %v1838, %v2457
    %v2459 = vlaneseq
    %v2460 = vshrl.u32 %v2459, 7
    %v2461 = vsub.s32 1, %v2460
    %v2462 = vrot.slane %v1842, %v2461
    %v2463 = vlaneseq
    %v2464 = vshrl.u32 %v2463, 7
    %v2465 = vsub.s32 1, %v2464
    %v2466 = vrot.slane %v1846, %v2465
    %v2467 = vlaneseq
    %v2468 = vshrl.u32 %v2467, 7
    %v2469 = vsub.s32 1, %v2468
    %v2470 = vrot.slane %v1850, %v2469
    %v2471 = vlaneseq
    %v2472 = vshrl.u32 %v2471, 7
    %v2473 = vsub.s32 1, %v2472
    %v2474 = vrot.slane %v1854, %v2473
    %v2475 = vlaneseq
    %v2476 = vshrl.u32 %v2475, 7
    %v2477 = vsub.s32 1, %v2476
    %v2478 = vrot.slane %v1858, %v2477
    %v2479 = vlaneseq
    %v2480 = vshrl.u32 %v2479, 7
    %v2481 = vsub.s32 1, %v2480
    %v2482 = vrot.slane %v1862, %v2481
    %v2483 = vlaneseq
    %v2484 = vshrl.u32 %v2483, 7
    %v2485 = vsub.s32 1, %v2484
    %v2486 = vrot.slane %v1866, %v2485
    %v2487 = vlaneseq
    %v2488 = vshrl.u32 %v2487, 7
    %v2489 = vsub.s32 1, %v2488
    %v2490 = vrot.slane %v1870, %v2489
    %v2491 = vlaneseq
    %v2492 = vshrl.u32 %v2491, 7
    %v2493 = vsub.s32 1, %v2492
    %v2494 = vrot.slane %v1874, %v2493
    %v2495 = vlaneseq
    %v2496 = vshrl.u32 %v2495, 7
    %v2497 = vsub.s32 1, %v2496
    %v2498 = vrot.slane %v1878, %v2497
    %v2499 = vlaneseq
    %v2500 = vshrl.u32 %v2499, 7
    %v2501 = vsub.s32 1, %v2500
    %v2502 = vrot.slane %v1882, %v2501
    %v2503 = vlaneseq
    %v2504 = vshrl.u32 %v2503, 7
    %v2505 = vsub.s32 1, %v2504
    %v2506 = vrot.slane %v1886, %v2505
    %v2507 = vlaneseq
    %v2508 = vshrl.u32 %v2507, 7
    %v2509 = vsub.s32 1, %v2508
    %v2510 = vrot.slane %v1890, %v2509
    %v2511 = vlaneseq
    %v2512 = vshrl.u32 %v2511, 7
    %v2513 = vsub.s32 1, %v2512
    %v2514 = vrot.slane %v1894, %v2513
    %v2515 = vlaneseq
    %v2516 = vshrl.u32 %v2515, 7
    %v2517 = vsub.s32 1, %v2516
    %v2518 = vrot.slane %v1898, %v2517
    %v2519 = vlaneseq
    %v2520 = vshrl.u32 %v2519, 7
    %v2521 = vsub.s32 1, %v2520
    %v2522 = vrot.slane %v1902, %v2521
    %v2523 = vlaneseq
    %v2524 = vshrl.u32 %v2523, 7
    %v2525 = vsub.s32 1, %v2524
    %v2526 = vrot.slane %v1906, %v2525
    %v2527 = vlaneseq
    %v2528 = vshrl.u32 %v2527, 7
    %v2529 = vsub.s32 1, %v2528
    %v2530 = vrot.slane %v1910, %v2529
    %v2531 = vlaneseq
    %v2532 = vshrl.u32 %v2531, 7
    %v2533 = vsub.s32 1, %v2532
    %v2534 = vrot.slane %v1914, %v2533
    %v2535 = vlaneseq
    %v2536 = vshrl.u32 %v2535, 7
    %v2537 = vsub.s32 1, %v2536
    %v2538 = vrot.slane %v1918, %v2537
    %v2539 = vlaneseq
    %v2540 = vshrl.u32 %v2539, 7
    %v2541 = vsub.s32 1, %v2540
    %v2542 = vrot.slane %v1922, %v2541
    %v2543 = vlaneseq
    %v2544 = vshrl.u32 %v2543, 7
    %v2545 = vsub.s32 1, %v2544
    %v2546 = vrot.slane %v1926, %v2545
    %v2547 = vlaneseq
    %v2548 = vshrl.u32 %v2547, 7
    %v2549 = vsub.s32 1, %v2548
    %v2550 = vrot.slane %v1930, %v2549
    %v2551 = vlaneseq
    %v2552 = vshrl.u32 %v2551, 7
    %v2553 = vsub.s32 1, %v2552
    %v2554 = vrot.slane %v1934, %v2553
    %v2555 = vlaneseq
    %v2556 = vshrl.u32 %v2555, 7
    %v2557 = vsub.s32 1, %v2556
    %v2558 = vrot.slane %v1938, %v2557
    %v2559 = vlaneseq
    %v2560 = vshrl.u32 %v2559, 7
    %v2561 = vsub.s32 1, %v2560
    %v2562 = vrot.slane %v1942, %v2561
    %v2563 = vlaneseq
    %v2564 = vshrl.u32 %v2563, 7
    %v2565 = vsub.s32 1, %v2564
    %v2566 = vrot.slane %v1946, %v2565
    %v2567 = vlaneseq
    %v2568 = vshrl.u32 %v2567, 7
    %v2569 = vsub.s32 1, %v2568
    %v2570 = vrot.slane %v1950, %v2569
    %v2571 = vlaneseq
    %v2572 = vshrl.u32 %v2571, 7
    %v2573 = vsub.s32 1, %v2572
    %v2574 = vrot.slane %v1954, %v2573
    %v2575 = vlaneseq
    %v2576 = vshrl.u32 %v2575, 7
    %v2577 = vsub.s32 1, %v2576
    %v2578 = vrot.slane %v1958, %v2577
    %v2579 = vlaneseq
    %v2580 = vshrl.u32 %v2579, 7
    %v2581 = vsub.s32 1, %v2580
    %v2582 = vrot.slane %v1962, %v2581
    %v2583 = vlaneseq
    %v2584 = vshrl.u32 %v2583, 7
    %v2585 = vsub.s32 1, %v2584
    %v2586 = vrot.slane %v1966, %v2585
    %v2587 = vlaneseq
    %v2588 = vshrl.u32 %v2587, 7
    %v2589 = vsub.s32 1, %v2588
    %v2590 = vrot.slane %v1970, %v2589
    %v2591 = vlaneseq
    %v2592 = vshrl.u32 %v2591, 7
    %v2593 = vsub.s32 1, %v2592
    %v2594 = vrot.slane %v1974, %v2593
    %v2595 = vlaneseq
    %v2596 = vshrl.u32 %v2595, 7
    %v2597 = vsub.s32 1, %v2596
    %v2598 = vrot.slane %v1978, %v2597
    %v2599 = vlaneseq
    %v2600 = vshrl.u32 %v2599, 7
    %v2601 = vsub.s32 1, %v2600
    %v2602 = vrot.slane %v1982, %v2601
    %v2603 = vlaneseq
    %v2604 = vshrl.u32 %v2603, 7
    %v2605 = vsub.s32 1, %v2604
    %v2606 = vrot.slane %v1986, %v2605
    %v2607 = vlaneseq
    %v2608 = vshrl.u32 %v2607, 7
    %v2609 = vsub.s32 1, %v2608
    %v2610 = vrot.slane %v1990, %v2609
    %v2611 = vlaneseq
    %v2612 = vshrl.u32 %v2611, 7
    %v2613 = vsub.s32 1, %v2612
    %v2614 = vrot.slane %v1994, %v2613
    %v2615 = vlaneseq
    %v2616 = vshrl.u32 %v2615, 7
    %v2617 = vsub.s32 1, %v2616
    %v2618 = vrot.slane %v1998, %v2617
    %v2619 = vlaneseq
    %v2620 = vshrl.u32 %v2619, 7
    %v2621 = vsub.s32 1, %v2620
    %v2622 = vrot.slane %v2002, %v2621
    %v2623 = vlaneseq
    %v2624 = vshrl.u32 %v2623, 7
    %v2625 = vsub.s32 1, %v2624
    %v2626 = vrot.slane %v2006, %v2625
    %v2627 = vlaneseq
    %v2628 = vshrl.u32 %v2627, 7
    %v2629 = vsub.s32 1, %v2628
    %v2630 = vrot.slane %v2010, %v2629
    %v2631 = vlaneseq
    %v2632 = vshrl.u32 %v2631, 7
    %v2633 = vsub.s32 1, %v2632
    %v2634 = vrot.slane %v2014, %v2633
    %v2635 = vlaneseq
    %v2636 = vshrl.u32 %v2635, 7
    %v2637 = vsub.s32 1, %v2636
    %v2638 = vrot.slane %v2018, %v2637
    %v2639 = vlaneseq
    %v2640 = vshrl.u32 %v2639, 7
    %v2641 = vsub.s32 1, %v2640
    %v2642 = vrot.slane %v2022, %v2641
    %v2643 = vlaneseq
    %v2644 = vshrl.u32 %v2643, 7
    %v2645 = vsub.s32 1, %v2644
    %v2646 = vrot.slane %v2026, %v2645
    %v2647 = vlaneseq
    %v2648 = vshrl.u32 %v2647, 7
    %v2649 = vsub.s32 1, %v2648
    %v2650 = vrot.slane %v2030, %v2649
    %v2651 = vlaneseq
    %v2652 = vshrl.u32 %v2651, 7
    %v2653 = vsub.s32 1, %v2652
    %v2654 = vrot.slane %v2034, %v2653
    %v2655 = vlaneseq
    %v2656 = vshrl.u32 %v2655, 7
    %v2657 = vsub.s32 1, %v2656
    %v2658 = vrot.slane %v2038, %v2657
    %v2659 = vlaneseq
    %v2660 = vshrl.u32 %v2659, 7
    %v2661 = vsub.s32 1, %v2660
    %v2662 = vrot.slane %v2042, %v2661
    %v2663 = vlaneseq
    %v2664 = vshrl.u32 %v2663, 7
    %v2665 = vsub.s32 1, %v2664
    %v2666 = vrot.slane %v2046, %v2665
    %v2667 = vlaneseq
    %v2668 = vshrl.u32 %v2667, 7
    %v2669 = vsub.s32 1, %v2668
    %v2670 = vrot.slane %v2050, %v2669
    %v2671 = vlaneseq
    %v2672 = vshrl.u32 %v2671, 7
    %v2673 = vsub.s32 1, %v2672
    %v2674 = vrot.slane %v2054, %v2673
    %v2675 = vlaneseq
    %v2676 = vshrl.u32 %v2675, 7
    %v2677 = vsub.s32 1, %v2676
    %v2678 = vrot.slane %v2058, %v2677
    %v2679 = vlaneseq
    %v2680 = vshrl.u32 %v2679, 7
    %v2681 = vsub.s32 1, %v2680
    %v2682 = vrot.slane %v2062, %v2681
    %v2683 = vlaneseq
    %v2684 = vshrl.u32 %v2683, 7
    %v2685 = vsub.s32 1, %v2684
    %v2686 = vrot.slane %v2066, %v2685
    %v2687 = vlaneseq
    %v2688 = vshrl.u32 %v2687, 7
    %v2689 = vsub.s32 1, %v2688
    %v2690 = vrot.slane %v2070, %v2689
    %v2691 = vlaneseq
    %v2692 = vshrl.u32 %v2691, 7
    %v2693 = vsub.s32 1, %v2692
    %v2694 = vrot.slane %v2074, %v2693
    %v2695 = vlaneseq
    %v2696 = vshrl.u32 %v2695, 7
    %v2697 = vsub.s32 1, %v2696
    %v2698 = vrot.slane %v2078, %v2697
    %v2699 = vlaneseq
    %v2700 = vshrl.u32 %v2699, 7
    %v2701 = vsub.s32 1, %v2700
    %v2702 = vrot.slane %v2082, %v2701
    %v2703 = vlaneseq
    %v2704 = vshrl.u32 %v2703, 7
    %v2705 = vsub.s32 1, %v2704
    %v2706 = vrot.slane %v2086, %v2705
    %v2707 = vmul.f32 %v38, %v2214
    %v2708 = vmul.f32 %v39, %v2218
    %v2709 = vmul.f32 %v40, %v2222
    %v2710 = vmul.f32 %v41, %v2226
    %v2711 = vmul.f32 %v42, %v2230
    %v2712 = vmul.f32 %v43, %v2234
    %v2713 = vmul.f32 %v44, %v2238
    %v2714 = vmul.f32 %v45, %v2242
    %v2715 = vmul.f32 %v46, %v2246
    %v2716 = vmul.f32 %v47, %v2250
    %v2717 = vmul.f32 %v48, %v2254
    %v2718 = vmul.f32 %v49, %v2258
    %v2719 = vmul.f32 %v50, %v2262
    %v2720 = vmul.f32 %v51, %v2266
    %v2721 = vmul.f32 %v52, %v2270
    %v2722 = vmul.f32 %v53, %v2274
    %v2723 = vmul.f32 %v54, %v2278
    %v2724 = vmul.f32 %v55, %v2282
    %v2725 = vmul.f32 %v56, %v2286
    %v2726 = vmul.f32 %v57, %v2290
    %v2727 = vmul.f32 %v58, %v2294
    %v2728 = vmul.f32 %v59, %v2298
    %v2729 = vmul.f32 %v60, %v2302
    %v2730 = vmul.f32 %v61, %v2306
    %v2731 = vmul.f32 %v62, %v2310
    %v2732 = vmul.f32 %v63, %v2314
    %v2733 = vmul.f32 %v64, %v2318
    %v2734 = vmul.f32 %v65, %v2322
    %v2735 = vmul.f32 %v66, %v2326
    %v2736 = vmul.f32 %v67, %v2330
    %v2737 = vmul.f32 %v68, %v2334
    %v2738 = vmul.f32 %v69, %v2338
    %v2739 = vmul.f32 %v70, %v2342
    %v2740 = vmul.f32 %v71, %v2346
    %v2741 = vmul.f32 %v72, %v2350
    %v2742 = vmul.f32 %v73, %v2354
    %v2743 = vmul.f32 %v74, %v2358
    %v2744 = vmul.f32 %v75, %v2362
    %v2745 = vmul.f32 %v76, %v2366
    %v2746 = vmul.f32 %v77, %v2370
    %v2747 = vmul.f32 %v78, %v2374
    %v2748 = vmul.f32 %v79, %v2378
    %v2749 = vmul.f32 %v80, %v2382
    %v2750 = vmul.f32 %v81, %v2386
    %v2751 = vmul.f32 %v82, %v2390
    %v2752 = vmul.f32 %v83, %v2394
    %v2753 = vmul.f32 %v84, %v2398
    %v2754 = vmul.f32 %v85, %v2402
    %v2755 = vmul.f32 %v86, %v2406
    %v2756 = vmul.f32 %v87, %v2410
    %v2757 = vmul.f32 %v88, %v2414
    %v2758 = vmul.f32 %v89, %v2418
    %v2759 = vmul.f32 %v90, %v2422
    %v2760 = vmul.f32 %v91, %v2426
    %v2761 = vmul.f32 %v92, %v2430
    %v2762 = vmul.f32 %v93, %v2434
    %v2763 = vmul.f32 %v94, %v2438
    %v2764 = vmul.f32 %v95, %v2442
    %v2765 = vmul.f32 %v96, %v2446
    %v2766 = vmul.f32 %v97, %v2450
    %v2767 = vmul.f32 %v98, %v2454
    %v2768 = vmul.f32 %v99, %v2458
    %v2769 = vmul.f32 %v100, %v2462
    %v2770 = vmul.f32 %v101, %v2466
    %v2771 = vmul.f32 %v102, %v2470
    %v2772 = vmul.f32 %v103, %v2474
    %v2773 = vmul.f32 %v104, %v2478
    %v2774 = vmul.f32 %v105, %v2482
    %v2775 = vmul.f32 %v106, %v2486
    %v2776 = vmul.f32 %v107, %v2490
    %v2777 = vmul.f32 %v108, %v2494
    %v2778 = vmul.f32 %v109, %v2498
    %v2779 = vmul.f32 %v110, %v2502
    %v2780 = vmul.f32 %v111, %v2506
    %v2781 = vmul.f32 %v112, %v2510
    %v2782 = vmul.f32 %v113, %v2514
    %v2783 = vmul.f32 %v114, %v2518
    %v2784 = vmul.f32 %v115, %v2522
    %v2785 = vmul.f32 %v116, %v2526
    %v2786 = vmul.f32 %v117, %v2530
    %v2787 = vmul.f32 %v118, %v2534
    %v2788 = vmul.f32 %v119, %v2538
    %v2789 = vmul.f32 %v120, %v2542
    %v2790 = vmul.f32 %v121, %v2546
    %v2791 = vmul.f32 %v122, %v2550
    %v2792 = vmul.f32 %v123, %v2554
    %v2793 = vmul.f32 %v124, %v2558
    %v2794 = vmul.f32 %v125, %v2562
    %v2795 = vmul.f32 %v126, %v2566
    %v2796 = vmul.f32 %v127, %v2570
    %v2797 = vmul.f32 %v128, %v2574
    %v2798 = vmul.f32 %v129, %v2578
    %v2799 = vmul.f32 %v130, %v2582
    %v2800 = vmul.f32 %v131, %v2586
    %v2801 = vmul.f32 %v132, %v2590
    %v2802 = vmul.f32 %v133, %v2594
    %v2803 = vmul.f32 %v134, %v2598
    %v2804 = vmul.f32 %v135, %v2602
    %v2805 = vmul.f32 %v136, %v2606
    %v2806 = vmul.f32 %v137, %v2610
    %v2807 = vmul.f32 %v138, %v2614
    %v2808 = vmul.f32 %v139, %v2618
    %v2809 = vmul.f32 %v140, %v2622
    %v2810 = vmul.f32 %v141, %v2626
    %v2811 = vmul.f32 %v142, %v2630
    %v2812 = vmul.f32 %v143, %v2634
    %v2813 = vmul.f32 %v144, %v2638
    %v2814 = vmul.f32 %v145, %v2642
    %v2815 = vmul.f32 %v146, %v2646
    %v2816 = vmul.f32 %v147, %v2650
    %v2817 = vmul.f32 %v148, %v2654
    %v2818 = vmul.f32 %v149, %v2658
    %v2819 = vmul.f32 %v150, %v2662
    %v2820 = vmul.f32 %v151, %v2666
    %v2821 = vmul.f32 %v152, %v2670
    %v2822 = vmul.f32 %v153, %v2674
    %v2823 = vmul.f32 %v154, %v2678
    %v2824 = vmul.f32 %v155, %v2682
    %v2825 = vmul.f32 %v156, %v2686
    %v2826 = vmul.f32 %v157, %v2690
    %v2827 = vmul.f32 %v158, %v2694
    %v2828 = vmul.f32 %v159, %v2698
    %v2829 = vmul.f32 %v160, %v2702
    %v2830 = vmul.f32 %v161, %v2706
    %v2831 = vadd.f32 %v2707, %v2708
    %v2832 = vadd.f32 %v2831, %v2709
    %v2833 = vadd.f32 %v2832, %v2710
    %v2834 = vadd.f32 %v2833, %v2711
    %v2835 = vadd.f32 %v2834, %v2712
    %v2836 = vadd.f32 %v2835, %v2713
    %v2837 = vadd.f32 %v2836, %v2714
    %v2838 = vadd.f32 %v2837, %v2715
    %v2839 = vadd.f32 %v2838, %v2716
    %v2840 = vadd.f32 %v2839, %v2717
    %v2841 = vadd.f32 %v2840, %v2718
    %v2842 = vadd.f32 %v2841, %v2719
    %v2843 = vadd.f32 %v2842, %v2720
    %v2844 = vadd.f32 %v2843, %v2721
    %v2845 = vadd.f32 %v2844, %v2722
    %v2846 = vadd.f32 %v2845, %v2723
    %v2847 = vadd.f32 %v2846, %v2724
    %v2848 = vadd.f32 %v2847, %v2725
    %v2849 = vadd.f32 %v2848, %v2726
    %v2850 = vadd.f32 %v2849, %v2727
    %v2851 = vadd.f32 %v2850, %v2728
    %v2852 = vadd.f32 %v2851, %v2729
    %v2853 = vadd.f32 %v2852, %v2730
    %v2854 = vadd.f32 %v2853, %v2731
    %v2855 = vadd.f32 %v2854, %v2732
    %v2856 = vadd.f32 %v2855, %v2733
    %v2857 = vadd.f32 %v2856, %v2734
    %v2858 = vadd.f32 %v2857, %v2735
    %v2859 = vadd.f32 %v2858, %v2736
    %v2860 = vadd.f32 %v2859, %v2737
    %v2861 = vadd.f32 %v2860, %v2738
    %v2862 = vadd.f32 %v2861, %v2739
    %v2863 = vadd.f32 %v2862, %v2740
    %v2864 = vadd.f32 %v2863, %v2741
    %v2865 = vadd.f32 %v2864, %v2742
    %v2866 = vadd.f32 %v2865, %v2743
    %v2867 = vadd.f32 %v2866, %v2744
    %v2868 = vadd.f32 %v2867, %v2745
    %v2869 = vadd.f32 %v2868, %v2746
    %v2870 = vadd.f32 %v2869, %v2747
    %v2871 = vadd.f32 %v2870, %v2748
    %v2872 = vadd.f32 %v2871, %v2749
    %v2873 = vadd.f32 %v2872, %v2750
    %v2874 = vadd.f32 %v2873, %v2751
    %v2875 = vadd.f32 %v2874, %v2752
    %v2876 = vadd.f32 %v2875, %v2753
    %v2877 = vadd.f32 %v2876, %v2754
    %v2878 = vadd.f32 %v2877, %v2755
    %v2879 = vadd.f32 %v2878, %v2756
    %v2880 = vadd.f32 %v2879, %v2757
    %v2881 = vadd.f32 %v2880, %v2758
    %v2882 = vadd.f32 %v2881, %v2759
    %v2883 = vadd.f32 %v2882, %v2760
    %v2884 = vadd.f32 %v2883, %v2761
    %v2885 = vadd.f32 %v2884, %v2762
    %v2886 = vadd.f32 %v2885, %v2763
    %v2887 = vadd.f32 %v2886, %v2764
    %v2888 = vadd.f32 %v2887, %v2765
    %v2889 = vadd.f32 %v2888, %v2766
    %v2890 = vadd.f32 %v2889, %v2767
    %v2891 = vadd.f32 %v2890, %v2768
    %v2892 = vadd.f32 %v2891, %v2769
    %v2893 = vadd.f32 %v2892, %v2770
    %v2894 = vadd.f32 %v2893, %v2771
    %v2895 = vadd.f32 %v2894, %v2772
    %v2896 = vadd.f32 %v2895, %v2773
    %v2897 = vadd.f32 %v2896, %v2774
    %v2898 = vadd.f32 %v2897, %v2775
    %v2899 = vadd.f32 %v2898, %v2776
    %v2900 = vadd.f32 %v2899, %v2777
    %v2901 = vadd.f32 %v2900, %v2778
    %v2902 = vadd.f32 %v2901, %v2779
    %v2903 = vadd.f32 %v2902, %v2780
    %v2904 = vadd.f32 %v2903, %v2781
    %v2905 = vadd.f32 %v2904, %v2782
    %v2906 = vadd.f32 %v2905, %v2783
    %v2907 = vadd.f32 %v2906, %v2784
    %v2908 = vadd.f32 %v2907, %v2785
    %v2909 = vadd.f32 %v2908, %v2786
    %v2910 = vadd.f32 %v2909, %v2787
    %v2911 = vadd.f32 %v2910, %v2788
    %v2912 = vadd.f32 %v2911, %v2789
    %v2913 = vadd.f32 %v2912, %v2790
    %v2914 = vadd.f32 %v2913, %v2791
    %v2915 = vadd.f32 %v2914, %v2792
    %v2916 = vadd.f32 %v2915, %v2793
    %v2917 = vadd.f32 %v2916, %v2794
    %v2918 = vadd.f32 %v2917, %v2795
    %v2919 = vadd.f32 %v2918, %v2796
    %v2920 = vadd.f32 %v2919, %v2797
    %v2921 = vadd.f32 %v2920, %v2798
    %v2922 = vadd.f32 %v2921, %v2799
    %v2923 = vadd.f32 %v2922, %v2800
    %v2924 = vadd.f32 %v2923, %v2801
    %v2925 = vadd.f32 %v2924, %v2802
    %v2926 = vadd.f32 %v2925, %v2803
    %v2927 = vadd.f32 %v2926, %v2804
    %v2928 = vadd.f32 %v2927, %v2805
    %v2929 = vadd.f32 %v2928, %v2806
    %v2930 = vadd.f32 %v2929, %v2807
    %v2931 = vadd.f32 %v2930, %v2808
    %v2932 = vadd.f32 %v2931, %v2809
    %v2933 = vadd.f32 %v2932, %v2810
    %v2934 = vadd.f32 %v2933, %v2811
    %v2935 = vadd.f32 %v2934, %v2812
    %v2936 = vadd.f32 %v2935, %v2813
    %v2937 = vadd.f32 %v2936, %v2814
    %v2938 = vadd.f32 %v2937, %v2815
    %v2939 = vadd.f32 %v2938, %v2816
    %v2940 = vadd.f32 %v2939, %v2817
    %v2941 = vadd.f32 %v2940, %v2818
    %v2942 = vadd.f32 %v2941, %v2819
    %v2943 = vadd.f32 %v2942, %v2820
    %v2944 = vadd.f32 %v2943, %v2821
    %v2945 = vadd.f32 %v2944, %v2822
    %v2946 = vadd.f32 %v2945, %v2823
    %v2947 = vadd.f32 %v2946, %v2824
    %v2948 = vadd.f32 %v2947, %v2825
    %v2949 = vadd.f32 %v2948, %v2826
    %v2950 = vadd.f32 %v2949, %v2827
    %v2951 = vadd.f32 %v2950, %v2828
    %v2952 = vadd.f32 %v2951, %v2829
    %v2953 = vsel %vm1586, %v2830, 0.0
    %v2954 = vadd.f32 %v2952, %v2953
    %2955 = vadd.xlane.f32.xlu0 %v2954
    %v2956 = vpop.xlane.xlu0 %2955
    %vm2957 = vcmask 7168
    %v2958 = vsel %vm2957, %v1590, %v2956
    %v2959 = vld [vmem:[%s2] sm:$0x1]
    %v2961 = vlaneseq
    %v2962 = vshrl.u32 %v2961, 7
    %v2963 = vsub.s32 0, %v2962
    %v2964 = vrot.slane %v2959, %v2963
    %v2966 = vadd.f32 %v2958, %v2964
    %vm2967 = vcmask 15360
    %2968 = vst.msk [vmem:[%s3] sm:$0xff] %vm2967, %v2966
    // Predicated region
    $region22: #{f4_forward.1} parent=1 // pred_check
      _
    $region23: #{f4_forward.1} parent=1 // pred_check_branch
      %2970 = sbr.rel (0) target = $region25
    $region24: #{f4_forward.1} parent=1 // pred_region
      _
    $region25: #{f4_forward.1} parent=1 // pred_fallthru
      _
    // Predicated region
    $region26: #{f4_forward.1} parent=1 // pred_check
      _
    $region27: #{f4_forward.1} parent=1 // pred_check_branch
      %2972 = sbr.rel (0) target = $region29
    $region28: #{f4_forward.1} parent=1 // pred_region
      _
    $region29: #{f4_forward.1} parent=1 // pred_fallthru
      _
    %2973 = vsyncpa [#allocation3], 1
    %2974 = vsyncpa [#allocation5], 1

</llo_original>
